<compile_context>
chip_gen: v7x
topology: tpu7x:2x2x1
jax: 0.10.0
libtpu: 0.0.40
codegen_flags: <defaults>
</compile_context>

<pallas_src>
import jax
import jax.numpy as jnp
from jax.experimental import pallas as pl
from jax.experimental.pallas import tpu as pltpu

# ---- small, shape-consistent config (scaled down from the original module) ----
B = 2              # batch
F_IN = 64          # stands in for 768*10*2 input dim of the first dense layer
HIDDEN = 32        # config.hidden_size
K = 2              # message-passing hops (self.k)
N_NODE = 8         # self.n_node (orig 50)
N_HEAD = 4         # self.n_head (orig 34)
H_SIZE = 32        # self.h_size (orig 1024)
GRAPH_HIDDEN = 16  # self.graph_hidden_size (orig 100)
N_LABELS = 3
OUT_PAD = 128      # lane-dense output width (caller slices back to N_LABELS)
EPS = 1e-20

HEXT = H_SIZE + 1          # [Z | D] fused feature width (last column carries D)
PACK_W = 4 + N_HEAD        # packed small-operand lane width: sa, ea, ua, pad, taT
assert N_HEAD <= N_NODE, "packed operand layout assumes n_head <= n_node"

# TODO(synk): nn.Dropout is treated as identity (eval mode); training-mode RNG mask not implemented.


# ------------------------------ fused kernel ------------------------------
# Single invocation, whole batch resident in VMEM:
#   dense+tanh -> K-hop diag-decomposed message passing with fused [Z | D]
#   -> mean over nodes -> graph_dense -> out_proj_graph -> out_proj.
def fused_head_kernel(f_ref, wd_ref, bd_ref, xg_ref, a_ref, pack_ref,
                      wext_ref, wgd_ref, bgd_ref, wpg_ref, bpg_ref,
                      wop_ref, bop_ref, o_ref):
    # ---- x = tanh(dense(dropout(features))) ; dropout == identity (eval) ----
    x = jnp.tanh(
        jnp.dot(f_ref[...], wd_ref[...], preferred_element_type=jnp.float32)
        + bd_ref[...])                                     # (B, HIDDEN), M = B on the MXU

    # ---- unpack the small per-batch operands from the single packed array ----
    P = pack_ref[...]                                      # (B, N_NODE, PACK_W)
    sa_col = P[:, :, 0:1]                                  # (B, N_NODE, 1)  start_attn
    ea_col = P[:, :, 1:2]                                  # (B, N_NODE, 1)  end_attn
    ua_col = P[:, :N_HEAD, 2:3]                            # (B, N_HEAD, 1)  uni_attn
    taT = P[:, :N_HEAD, 4:4 + N_HEAD]                      # (B, N_HEAD, N_HEAD); taT[b,k,h] = trans_attn[b,h,k]

    Xe = xg_ref[...]                                       # (B, N_NODE, HEXT) node feats + ones column
    A = a_ref[...]                                         # (B*N_HEAD, N_NODE, N_NODE)

    # ---- graph message passing (diag_decompose=True), batched over B, fused [Z | D] ----
    ZD = Xe * sa_col                                       # (B, N_NODE, HEXT) = [X*sa | sa]
    ZDh = None
    for t in range(K):
        Wt = wext_ref[t]                                   # (N_HEAD, HEXT); ones in the D column
        if t == 0:
            ZDp = ZD[:, None, :, :] * Wt[None, :, None, :]           # (B, N_HEAD, N_NODE, HEXT)
        else:
            # head transition: T1[b,k] = sum_h trans_attn[b,h,k] * ZDh[b,h]
            # TODO(synk): at production dims (n_head=34, n_node=50, h=1024) rewrite this
            # as an MXU contraction (taT @ ZDh reshaped to (n_head, n_node*HEXT)); the
            # broadcast intermediate below is ~34 KB here but ~240 MB at production.
            T1 = jnp.sum(ZDh[:, None, :, :, :] * taT[:, :, :, None, None], axis=2)
            ZDp = T1 * Wt[None, :, None, :]
        ZDp = ZDp * ua_col[:, :, :, None]                  # uni_attn per head
        ZDp = ZDp.reshape(B * N_HEAD, N_NODE, HEXT)        # leading-dim merge: layout no-op
        ZDh = jnp.einsum('gij,gjd->gid', A, ZDp,           # per-(batch,head) A @ [Z | D] (MXU)
                         preferred_element_type=jnp.float32
                         ).reshape(B, N_HEAD, N_NODE, HEXT)
    ZDs = jnp.sum(ZDh, axis=1) * ea_col                    # (B, N_NODE, HEXT), end_attn applied to Z and D
    graph_reps = ZDs[:, :, :H_SIZE] / (ZDs[:, :, H_SIZE:] + EPS)   # (B, N_NODE, H_SIZE)
    mean_g = jnp.mean(graph_reps, axis=1)                  # (B, H_SIZE)  torch.mean(.., 1)

    # ---- graph_dense -> concat -> out_proj_graph -> out_proj (all M = B) ----
    g = jnp.dot(mean_g, wgd_ref[...],
                preferred_element_type=jnp.float32) + bgd_ref[...]          # (B, GRAPH_HIDDEN)
    # concat([x, g], 1) @ W_opg == x @ W_opg[:HIDDEN] + g @ W_opg[HIDDEN:]
    h = (jnp.dot(x, wpg_ref[:HIDDEN, :], preferred_element_type=jnp.float32)
         + jnp.dot(g, wpg_ref[HIDDEN:, :], preferred_element_type=jnp.float32)
         + bpg_ref[...])                                   # (B, HIDDEN)
    o_ref[...] = (jnp.dot(h, wop_ref[...], preferred_element_type=jnp.float32)
                  + bop_ref[...])                          # (B, OUT_PAD) lane-dense store


# ------------------------------ params ------------------------------
def init_params(key):
    ks = jax.random.split(key, 9)
    s = 0.1
    return {
        'dense_w': jax.random.normal(ks[0], (F_IN, HIDDEN), jnp.float32) * s,
        'dense_b': jax.random.normal(ks[1], (1, HIDDEN), jnp.float32) * s,
        # MultiHopMessagePassingLayerDeprecated, diag_decompose=True, n_basis=0
        'w_vs': jax.random.normal(ks[2], (K, H_SIZE, N_HEAD), jnp.float32) * 0.3,
        'graph_dense_w': jax.random.normal(ks[3], (H_SIZE, GRAPH_HIDDEN), jnp.float32) * s,
        'graph_dense_b': jax.random.normal(ks[4], (1, GRAPH_HIDDEN), jnp.float32) * s,
        'out_proj_graph_w': jax.random.normal(ks[5], (HIDDEN + GRAPH_HIDDEN, HIDDEN), jnp.float32) * s,
        'out_proj_graph_b': jax.random.normal(ks[6], (1, HIDDEN), jnp.float32) * s,
        'out_proj_w': jax.random.normal(ks[7], (HIDDEN, N_LABELS), jnp.float32) * s,
        'out_proj_b': jax.random.normal(ks[8], (1, N_LABELS), jnp.float32) * s,
    }


def prepare_params(params):
    """One-time layout prep for the kernel (done at init time, not per forward)."""
    w_vs_t = jnp.swapaxes(params['w_vs'], 1, 2)                       # (K, N_HEAD, H_SIZE)
    ones_col = jnp.ones((K, N_HEAD, 1), jnp.float32)                  # D column passes through w_vs
    return {
        'dense_w': params['dense_w'],
        'dense_b': params['dense_b'],
        'w_vs_ext': jnp.concatenate([w_vs_t, ones_col], axis=-1),     # (K, N_HEAD, HEXT)
        'graph_dense_w': params['graph_dense_w'],
        'graph_dense_b': params['graph_dense_b'],
        'out_proj_graph_w': params['out_proj_graph_w'],               # sliced inside the kernel
        'out_proj_graph_b': params['out_proj_graph_b'],
        # zero-pad the final projection to a lane-dense 128-wide output block
        'out_proj_w_pad': jnp.pad(params['out_proj_w'], ((0, 0), (0, OUT_PAD - N_LABELS))),
        'out_proj_b_pad': jnp.pad(params['out_proj_b'], ((0, 0), (0, OUT_PAD - N_LABELS))),
    }


# ------------------------------ wrapper ------------------------------
def forward(kparams, features, X, adj, start_attn, end_attn, uni_attn, trans_attn):
    # Per-forward layout prep (plain XLA, outside the kernel):
    #   * append a ones column to the node features so the D normalizer rides along as
    #     an extra feature column ([Z | D] fusion) with no in-kernel concatenate,
    #   * pack all tiny per-batch attention operands into one small array (one DMA),
    #   * pre-merge (B, n_head) leading dims of the adjacency so the per-head einsum
    #     uses a single batch dim.
    xg_ext = jnp.concatenate([adj, jnp.ones((B, N_NODE, 1), adj.dtype)], axis=-1)   # (B, N_NODE, HEXT)
    a_merged = X.reshape(B * N_HEAD, N_NODE, N_NODE)

    pack = jnp.zeros((B, N_NODE, PACK_W), jnp.float32)
    pack = pack.at[:, :, 0].set(start_attn)
    pack = pack.at[:, :, 1].set(end_attn)
    pack = pack.at[:, :N_HEAD, 2].set(uni_attn)
    pack = pack.at[:, :N_HEAD, 4:4 + N_HEAD].set(jnp.swapaxes(trans_attn, 1, 2))    # taT[b,k,h]

    vmem = pl.BlockSpec(memory_space=pltpu.MemorySpace.VMEM)
    out_pad = pl.pallas_call(
        fused_head_kernel,
        out_shape=jax.ShapeDtypeStruct((B, OUT_PAD), jnp.float32),
        in_specs=[vmem] * 13,
        out_specs=vmem,
    )(features, kparams['dense_w'], kparams['dense_b'], xg_ext, a_merged, pack,
      kparams['w_vs_ext'], kparams['graph_dense_w'], kparams['graph_dense_b'],
      kparams['out_proj_graph_w'], kparams['out_proj_graph_b'],
      kparams['out_proj_w_pad'], kparams['out_proj_b_pad'])

    return out_pad[:, :N_LABELS]


# ------------------------- pure-JAX reference (for checking) -------------------------
def reference(params, features, X, adj, start_attn, end_attn, uni_attn, trans_attn):
    x = jnp.tanh(features @ params['dense_w'] + params['dense_b'])
    Xg, A, W = adj, X, params['w_vs']
    Z = Xg * start_attn[:, :, None]
    for t in range(K):
        if t == 0:
            Z = Z[:, :, :, None] * W[t]                        # (B, n_node, h, n_head)
        else:
            Z = Z[:, :, :, :, None] * W[t]                     # (B, n_head, n_node, h, n_head)
            Z = Z * trans_attn[:, :, None, None, :]
            Z = Z.sum(1)
        Z = jnp.transpose(Z, (0, 3, 1, 2))                     # (B, n_head, n_node, h)
        Z = Z * uni_attn[:, :, None, None]
        Z = jnp.einsum('bhij,bhjd->bhid', A, Z)
    Z = Z.sum(1) * end_attn[:, :, None]
    D = jnp.broadcast_to(start_attn[:, None, :], (B, N_HEAD, N_NODE))
    for t in range(K):
        if t > 0:
            D = (D[:, :, None, :] * trans_attn[:, :, :, None]).sum(1)
        D = D * uni_attn[:, :, None]
        D = jnp.einsum('bhij,bhj->bhi', A, D)
    D = D.sum(1) * end_attn
    graph_reps = Z / (D[:, :, None] + EPS)
    g = graph_reps.mean(1) @ params['graph_dense_w'] + params['graph_dense_b']
    h = (jnp.concatenate([x, g], axis=1) @ params['out_proj_graph_w']
         + params['out_proj_graph_b'])
    return h @ params['out_proj_w'] + params['out_proj_b']


if __name__ == "__main__":
    key = jax.random.PRNGKey(0)
    kp, k1, k2, k3, k4, k5, k6, k7 = jax.random.split(key, 8)
    params = init_params(kp)
    kernel_params = prepare_params(params)

    features = jax.random.normal(k1, (B, F_IN), jnp.float32)
    # NOTE: in this head `X` is consumed as the adjacency tensor, `adj` as node features.
    X = jax.random.uniform(k2, (B, N_HEAD, N_NODE, N_NODE), jnp.float32, 0.1, 1.0)
    adj = jax.random.normal(k3, (B, N_NODE, H_SIZE), jnp.float32)
    start_attn = jax.random.uniform(k4, (B, N_NODE), jnp.float32, 0.5, 1.5)
    end_attn = jax.random.uniform(k5, (B, N_NODE), jnp.float32, 0.5, 1.5)
    uni_attn = jax.random.uniform(k6, (B, N_HEAD), jnp.float32, 0.5, 1.5)
    trans_attn = jax.random.uniform(k7, (B, N_HEAD, N_HEAD), jnp.float32, 0.5, 1.5)

    out = forward(kernel_params, features, X, adj,
                  start_attn, end_attn, uni_attn, trans_attn)
    out = jax.block_until_ready(out)

    ref = reference(params, features, X, adj,
                    start_attn, end_attn, uni_attn, trans_attn)
    assert out.shape == (B, N_LABELS)
    assert jnp.allclose(out, ref, rtol=2e-2, atol=2e-2), (out, ref)
    print("KERNEL_OK")
</pallas_src>

<mosaic_0001>
module attributes {stable_mosaic.version = 11 : i64} {
  func.func @fused_head_kernel(%arg0: memref<2x64xf32, #tpu.memory_space<vmem>>, %arg1: memref<64x32xf32, #tpu.memory_space<vmem>>, %arg2: memref<1x32xf32, #tpu.memory_space<vmem>>, %arg3: memref<2x8x33xf32, #tpu.memory_space<vmem>>, %arg4: memref<8x8x8xf32, #tpu.memory_space<vmem>>, %arg5: memref<2x8x8xf32, #tpu.memory_space<vmem>>, %arg6: memref<2x4x33xf32, #tpu.memory_space<vmem>>, %arg7: memref<32x16xf32, #tpu.memory_space<vmem>>, %arg8: memref<1x16xf32, #tpu.memory_space<vmem>>, %arg9: memref<48x32xf32, #tpu.memory_space<vmem>>, %arg10: memref<1x32xf32, #tpu.memory_space<vmem>>, %arg11: memref<32x128xf32, #tpu.memory_space<vmem>>, %arg12: memref<1x128xf32, #tpu.memory_space<vmem>>, %arg13: memref<2x128xf32, #tpu.memory_space<vmem>>) attributes {dimension_semantics = [], scalar_prefetch = 0 : i64, scratch_operands = 0 : i64, tpu.core_type = #tpu.core_type<tc>} {
    %c0 = arith.constant 0 : index
    %c0_0 = arith.constant 0 : index
    %0 = vector.load %arg0[%c0, %c0_0] : memref<2x64xf32, #tpu.memory_space<vmem>>, vector<2x64xf32>
    %c0_1 = arith.constant 0 : index
    %c0_2 = arith.constant 0 : index
    %1 = vector.load %arg1[%c0_1, %c0_2] : memref<64x32xf32, #tpu.memory_space<vmem>>, vector<64x32xf32>
    %cst = arith.constant dense<0.000000e+00> : vector<2x32xf32>
    %2 = tpu.matmul %0, %1, %cst {dimension_numbers = #tpu.dot_dimension_numbers<[1], [0], [0], [1], [0, 0, 1, 1], [], []>} : vector<2x64xf32>, vector<64x32xf32>, vector<2x32xf32> -> vector<2x32xf32>
    %c0_3 = arith.constant 0 : index
    %c0_4 = arith.constant 0 : index
    %3 = vector.load %arg2[%c0_3, %c0_4] : memref<1x32xf32, #tpu.memory_space<vmem>>, vector<1x32xf32>
    %4 = vector.broadcast %3 : vector<1x32xf32> to vector<2x32xf32>
    %5 = arith.addf %2, %4 : vector<2x32xf32>
    %6 = math.tanh %5 : vector<2x32xf32>
    %c0_5 = arith.constant 0 : index
    %c0_6 = arith.constant 0 : index
    %c0_7 = arith.constant 0 : index
    %7 = vector.load %arg5[%c0_5, %c0_6, %c0_7] : memref<2x8x8xf32, #tpu.memory_space<vmem>>, vector<2x8x8xf32>
    %8 = vector.extract_strided_slice %7 {offsets = [0, 0, 0], sizes = [2, 8, 1], strides = [1, 1, 1]} : vector<2x8x8xf32> to vector<2x8x1xf32>
    %9 = vector.extract_strided_slice %7 {offsets = [0, 0, 1], sizes = [2, 8, 1], strides = [1, 1, 1]} : vector<2x8x8xf32> to vector<2x8x1xf32>
    %10 = vector.extract_strided_slice %7 {offsets = [0, 0, 2], sizes = [2, 4, 1], strides = [1, 1, 1]} : vector<2x8x8xf32> to vector<2x4x1xf32>
    %11 = vector.extract_strided_slice %7 {offsets = [0, 0, 4], sizes = [2, 4, 4], strides = [1, 1, 1]} : vector<2x8x8xf32> to vector<2x4x4xf32>
    %c0_8 = arith.constant 0 : index
    %c0_9 = arith.constant 0 : index
    %c0_10 = arith.constant 0 : index
    %12 = vector.load %arg3[%c0_8, %c0_9, %c0_10] : memref<2x8x33xf32, #tpu.memory_space<vmem>>, vector<2x8x33xf32>
    %c0_11 = arith.constant 0 : index
    %c0_12 = arith.constant 0 : index
    %c0_13 = arith.constant 0 : index
    %13 = vector.load %arg4[%c0_11, %c0_12, %c0_13] : memref<8x8x8xf32, #tpu.memory_space<vmem>>, vector<8x8x8xf32>
    %14 = vector.broadcast %8 : vector<2x8x1xf32> to vector<2x8x33xf32>
    %15 = arith.mulf %12, %14 : vector<2x8x33xf32>
    %c0_14 = arith.constant 0 : index
    %c0_15 = arith.constant 0 : index
    %c0_16 = arith.constant 0 : index
    %16 = vector.load %arg6[%c0_14, %c0_15, %c0_16] : memref<2x4x33xf32, #tpu.memory_space<vmem>>, vector<1x4x33xf32>
    %17 = vector.shape_cast %16 : vector<1x4x33xf32> to vector<4x33xf32>
    %18 = vector.shape_cast %15 : vector<2x8x33xf32> to vector<2x1x8x33xf32>
    %19 = vector.shape_cast %17 : vector<4x33xf32> to vector<1x4x1x33xf32>
    %20 = vector.broadcast %18 : vector<2x1x8x33xf32> to vector<2x4x8x33xf32>
    %21 = vector.broadcast %19 : vector<1x4x1x33xf32> to vector<2x4x8x33xf32>
    %22 = arith.mulf %20, %21 : vector<2x4x8x33xf32>
    %23 = vector.shape_cast %10 : vector<2x4x1xf32> to vector<2x4x1x1xf32>
    %24 = vector.broadcast %23 : vector<2x4x1x1xf32> to vector<2x4x8x33xf32>
    %25 = arith.mulf %22, %24 : vector<2x4x8x33xf32>
    %26 = vector.shape_cast %25 : vector<2x4x8x33xf32> to vector<8x8x33xf32>
    "tpu.trace_start"() <{level = 10 : i32, message = "gij,gjd->gid"}> : () -> ()
    %cst_17 = arith.constant dense<0.000000e+00> : vector<8x8x33xf32>
    %27 = tpu.matmul %13, %26, %cst_17 {dimension_numbers = #tpu.dot_dimension_numbers<[2], [1], [1], [2], [0, 0, 0, 1, 1, 2], [0], [0]>} : vector<8x8x8xf32>, vector<8x8x33xf32>, vector<8x8x33xf32> -> vector<8x8x33xf32>
    "tpu.trace_stop"() : () -> ()
    %28 = vector.shape_cast %27 : vector<8x8x33xf32> to vector<2x4x8x33xf32>
    %c1 = arith.constant 1 : index
    %c0_18 = arith.constant 0 : index
    %c0_19 = arith.constant 0 : index
    %29 = vector.load %arg6[%c1, %c0_18, %c0_19] : memref<2x4x33xf32, #tpu.memory_space<vmem>>, vector<1x4x33xf32>
    %30 = vector.shape_cast %29 : vector<1x4x33xf32> to vector<4x33xf32>
    %31 = vector.shape_cast %28 : vector<2x4x8x33xf32> to vector<2x1x4x8x33xf32>
    %32 = vector.shape_cast %11 : vector<2x4x4xf32> to vector<2x4x4x1x1xf32>
    %33 = vector.broadcast %31 : vector<2x1x4x8x33xf32> to vector<2x4x4x8x33xf32>
    %34 = vector.broadcast %32 : vector<2x4x4x1x1xf32> to vector<2x4x4x8x33xf32>
    %35 = arith.mulf %33, %34 : vector<2x4x4x8x33xf32>
    %cst_20 = arith.constant dense<0.000000e+00> : vector<2x4x8x33xf32>
    %36 = vector.multi_reduction <add>, %35, %cst_20 [2] : vector<2x4x4x8x33xf32> to vector<2x4x8x33xf32>
    %37 = vector.shape_cast %30 : vector<4x33xf32> to vector<1x4x1x33xf32>
    %38 = vector.broadcast %37 : vector<1x4x1x33xf32> to vector<2x4x8x33xf32>
    %39 = arith.mulf %36, %38 : vector<2x4x8x33xf32>
    %40 = vector.shape_cast %10 : vector<2x4x1xf32> to vector<2x4x1x1xf32>
    %41 = vector.broadcast %40 : vector<2x4x1x1xf32> to vector<2x4x8x33xf32>
    %42 = arith.mulf %39, %41 : vector<2x4x8x33xf32>
    %43 = vector.shape_cast %42 : vector<2x4x8x33xf32> to vector<8x8x33xf32>
    "tpu.trace_start"() <{level = 10 : i32, message = "gij,gjd->gid"}> : () -> ()
    %cst_21 = arith.constant dense<0.000000e+00> : vector<8x8x33xf32>
    %44 = tpu.matmul %13, %43, %cst_21 {dimension_numbers = #tpu.dot_dimension_numbers<[2], [1], [1], [2], [0, 0, 0, 1, 1, 2], [0], [0]>} : vector<8x8x8xf32>, vector<8x8x33xf32>, vector<8x8x33xf32> -> vector<8x8x33xf32>
    "tpu.trace_stop"() : () -> ()
    %45 = vector.shape_cast %44 : vector<8x8x33xf32> to vector<2x4x8x33xf32>
    %cst_22 = arith.constant dense<0.000000e+00> : vector<2x8x33xf32>
    %46 = vector.multi_reduction <add>, %45, %cst_22 [1] : vector<2x4x8x33xf32> to vector<2x8x33xf32>
    %47 = vector.broadcast %9 : vector<2x8x1xf32> to vector<2x8x33xf32>
    %48 = arith.mulf %46, %47 : vector<2x8x33xf32>
    %49 = vector.extract_strided_slice %48 {offsets = [0, 0, 0], sizes = [2, 8, 32], strides = [1, 1, 1]} : vector<2x8x33xf32> to vector<2x8x32xf32>
    %50 = vector.extract_strided_slice %48 {offsets = [0, 0, 32], sizes = [2, 8, 1], strides = [1, 1, 1]} : vector<2x8x33xf32> to vector<2x8x1xf32>
    %cst_23 = arith.constant 9.99999968E-21 : f32
    %51 = vector.broadcast %cst_23 : f32 to vector<2x8x1xf32>
    %52 = arith.addf %50, %51 : vector<2x8x1xf32>
    %53 = vector.broadcast %52 : vector<2x8x1xf32> to vector<2x8x32xf32>
    %54 = arith.divf %49, %53 : vector<2x8x32xf32>
    %cst_24 = arith.constant dense<0.000000e+00> : vector<2x32xf32>
    %55 = vector.multi_reduction <add>, %54, %cst_24 [1] : vector<2x8x32xf32> to vector<2x32xf32>
    %cst_25 = arith.constant 8.000000e+00 : f32
    %56 = vector.broadcast %cst_25 : f32 to vector<2x32xf32>
    %57 = arith.divf %55, %56 : vector<2x32xf32>
    %c0_26 = arith.constant 0 : index
    %c0_27 = arith.constant 0 : index
    %58 = vector.load %arg7[%c0_26, %c0_27] : memref<32x16xf32, #tpu.memory_space<vmem>>, vector<32x16xf32>
    %cst_28 = arith.constant dense<0.000000e+00> : vector<2x16xf32>
    %59 = tpu.matmul %57, %58, %cst_28 {dimension_numbers = #tpu.dot_dimension_numbers<[1], [0], [0], [1], [0, 0, 1, 1], [], []>} : vector<2x32xf32>, vector<32x16xf32>, vector<2x16xf32> -> vector<2x16xf32>
    %c0_29 = arith.constant 0 : index
    %c0_30 = arith.constant 0 : index
    %60 = vector.load %arg8[%c0_29, %c0_30] : memref<1x16xf32, #tpu.memory_space<vmem>>, vector<1x16xf32>
    %61 = vector.broadcast %60 : vector<1x16xf32> to vector<2x16xf32>
    %62 = arith.addf %59, %61 : vector<2x16xf32>
    %c0_31 = arith.constant 0 : index
    %c0_32 = arith.constant 0 : index
    %63 = vector.load %arg9[%c0_31, %c0_32] : memref<48x32xf32, #tpu.memory_space<vmem>>, vector<32x32xf32>
    %cst_33 = arith.constant dense<0.000000e+00> : vector<2x32xf32>
    %64 = tpu.matmul %6, %63, %cst_33 {dimension_numbers = #tpu.dot_dimension_numbers<[1], [0], [0], [1], [0, 0, 1, 1], [], []>} : vector<2x32xf32>, vector<32x32xf32>, vector<2x32xf32> -> vector<2x32xf32>
    %c32 = arith.constant 32 : index
    %c0_34 = arith.constant 0 : index
    %65 = vector.load %arg9[%c32, %c0_34] : memref<48x32xf32, #tpu.memory_space<vmem>>, vector<16x32xf32>
    %cst_35 = arith.constant dense<0.000000e+00> : vector<2x32xf32>
    %66 = tpu.matmul %62, %65, %cst_35 {dimension_numbers = #tpu.dot_dimension_numbers<[1], [0], [0], [1], [0, 0, 1, 1], [], []>} : vector<2x16xf32>, vector<16x32xf32>, vector<2x32xf32> -> vector<2x32xf32>
    %67 = arith.addf %64, %66 : vector<2x32xf32>
    %c0_36 = arith.constant 0 : index
    %c0_37 = arith.constant 0 : index
    %68 = vector.load %arg10[%c0_36, %c0_37] : memref<1x32xf32, #tpu.memory_space<vmem>>, vector<1x32xf32>
    %69 = vector.broadcast %68 : vector<1x32xf32> to vector<2x32xf32>
    %70 = arith.addf %67, %69 : vector<2x32xf32>
    %c0_38 = arith.constant 0 : index
    %c0_39 = arith.constant 0 : index
    %71 = vector.load %arg11[%c0_38, %c0_39] : memref<32x128xf32, #tpu.memory_space<vmem>>, vector<32x128xf32>
    %cst_40 = arith.constant dense<0.000000e+00> : vector<2x128xf32>
    %72 = tpu.matmul %70, %71, %cst_40 {dimension_numbers = #tpu.dot_dimension_numbers<[1], [0], [0], [1], [0, 0, 1, 1], [], []>} : vector<2x32xf32>, vector<32x128xf32>, vector<2x128xf32> -> vector<2x128xf32>
    %c0_41 = arith.constant 0 : index
    %c0_42 = arith.constant 0 : index
    %73 = vector.load %arg12[%c0_41, %c0_42] : memref<1x128xf32, #tpu.memory_space<vmem>>, vector<1x128xf32>
    %74 = vector.broadcast %73 : vector<1x128xf32> to vector<2x128xf32>
    %75 = arith.addf %72, %74 : vector<2x128xf32>
    %c0_43 = arith.constant 0 : index
    %c0_44 = arith.constant 0 : index
    %76 = vector.load %arg13[%c0_43, %c0_44] : memref<2x128xf32, #tpu.memory_space<vmem>>, vector<2x128xf32>
    tpu.vector_store %arg13[%c0_43, %c0_44], %75 {strides = array<i32>} : memref<2x128xf32, #tpu.memory_space<vmem>>, vector<2x128xf32>,
    return
  }
}

</mosaic_0001>

<llo_original>
// kernel: tpu_custom_call.1
$region0: #{tpu_custom_call.1}
  #allocation0 [shape = 'u32[]', space=smem, size = 0x4, offset = 0x4, fixed_abs, tag = 'smem constant byte address 0x4 - core index']
  #allocation1 [shape = 'u32[144,128]{1,0:T(1,128)}', space=vmem, size = 0x12000, scoped, tag = 'internal scratch']
  %s0 = inlined_call_operand.vmem [shape: f32[2,64], index: 0, kind: input, shape index: {}]
  %s1 = inlined_call_operand.vmem [shape: f32[64,32], index: 1, kind: input, shape index: {}]
  %s2 = inlined_call_operand.vmem [shape: f32[1,32], index: 2, kind: input, shape index: {}]
  %s3 = inlined_call_operand.vmem [shape: f32[2,8,33], index: 3, kind: input, shape index: {}]
  %s4 = inlined_call_operand.vmem [shape: f32[8,8,8], index: 4, kind: input, shape index: {}]
  %s5 = inlined_call_operand.vmem [shape: f32[2,8,8], index: 5, kind: input, shape index: {}]
  %s6 = inlined_call_operand.vmem [shape: f32[2,4,33], index: 6, kind: input, shape index: {}]
  %s7 = inlined_call_operand.vmem [shape: f32[32,16], index: 7, kind: input, shape index: {}]
  %s8 = inlined_call_operand.vmem [shape: f32[1,16], index: 8, kind: input, shape index: {}]
  %s9 = inlined_call_operand.vmem [shape: f32[48,32], index: 9, kind: input, shape index: {}]
  %s10 = inlined_call_operand.vmem [shape: f32[1,32], index: 10, kind: input, shape index: {}]
  %s11 = inlined_call_operand.vmem [shape: f32[32,128], index: 11, kind: input, shape index: {}]
  %s12 = inlined_call_operand.vmem [shape: f32[1,128], index: 12, kind: input, shape index: {}]
  %s13 = inlined_call_operand.hbm [shape: f32[2,128], index: 13, kind: output, shape index: {}]
  %s14 = sld [smem:[#allocation0]]
  $region62: #{tpu_custom_call.1} parent=0
    _
  %s16 = ssub.s32 1, %s14
  %s17 = scalar_select 0, %s16, %s14
  $region1: #{tpu_custom_call.1} parent=0
    #allocation2 [shape = 'u8[1024]{0}', space=vmem, size = 0x400, scoped, tag = 'output window, operand 0, single buffered']
    #allocation3 [shape = 's32[1]{0}', space=sflag, size = 0x4, scoped, tag = 'scoped memory for tpu_custom_call.1']
    %18 = vsyncpa [#allocation3], 0
    // Predicated region
    $region2: #{tpu_custom_call.1} parent=1 // pred_check
      _
    $region3: #{tpu_custom_call.1} parent=1 // pred_check_branch
      %20 = sbr.rel (0) target = $region5
    $region4: #{tpu_custom_call.1} parent=1 // pred_region
      _
    $region5: #{tpu_custom_call.1} parent=1 // pred_fallthru
      _
    // Predicated region
    $region6: #{tpu_custom_call.1} parent=1 // pred_check
      _
    $region7: #{tpu_custom_call.1} parent=1 // pred_check_branch
      %22 = sbr.rel (0) target = $region9
    $region8: #{tpu_custom_call.1} parent=1 // pred_region
      _
    $region9: #{tpu_custom_call.1} parent=1 // pred_fallthru
      _
    // Predicated region
    $region10: #{tpu_custom_call.1} parent=1 // pred_check
      _
    $region11: #{tpu_custom_call.1} parent=1 // pred_check_branch
      %24 = sbr.rel (0) target = $region13
    $region12: #{tpu_custom_call.1} parent=1 // pred_region
      _
    $region13: #{tpu_custom_call.1} parent=1 // pred_fallthru
      _
    // Predicated region
    $region14: #{tpu_custom_call.1} parent=1 // pred_check
      _
    $region15: #{tpu_custom_call.1} parent=1 // pred_check_branch
      %26 = sbr.rel (0) target = $region17
    $region16: #{tpu_custom_call.1} parent=1 // pred_region
      _
    $region17: #{tpu_custom_call.1} parent=1 // pred_fallthru
      _
    // Predicated region
    $region18: #{tpu_custom_call.1} parent=1 // pred_check
      _
    $region19: #{tpu_custom_call.1} parent=1 // pred_check_branch
      %28 = sbr.rel (0) target = $region21
    $region20: #{tpu_custom_call.1} parent=1 // pred_region
      _
    $region21: #{tpu_custom_call.1} parent=1 // pred_fallthru
      _
    // Predicated region
    $region22: #{tpu_custom_call.1} parent=1 // pred_check
      _
    $region23: #{tpu_custom_call.1} parent=1 // pred_check_branch
      %30 = sbr.rel (0) target = $region25
    $region24: #{tpu_custom_call.1} parent=1 // pred_region
      _
    $region25: #{tpu_custom_call.1} parent=1 // pred_fallthru
      _
    // Predicated region
    $region26: #{tpu_custom_call.1} parent=1 // pred_check
      _
    $region27: #{tpu_custom_call.1} parent=1 // pred_check_branch
      %32 = sbr.rel (0) target = $region29
    $region28: #{tpu_custom_call.1} parent=1 // pred_region
      _
    $region29: #{tpu_custom_call.1} parent=1 // pred_fallthru
      _
    // Predicated region
    $region30: #{tpu_custom_call.1} parent=1 // pred_check
      _
    $region31: #{tpu_custom_call.1} parent=1 // pred_check_branch
      %34 = sbr.rel (0) target = $region33
    $region32: #{tpu_custom_call.1} parent=1 // pred_region
      _
    $region33: #{tpu_custom_call.1} parent=1 // pred_fallthru
      _
    // Predicated region
    $region34: #{tpu_custom_call.1} parent=1 // pred_check
      _
    $region35: #{tpu_custom_call.1} parent=1 // pred_check_branch
      %36 = sbr.rel (0) target = $region37
    $region36: #{tpu_custom_call.1} parent=1 // pred_region
      _
    $region37: #{tpu_custom_call.1} parent=1 // pred_fallthru
      _
    // Predicated region
    $region38: #{tpu_custom_call.1} parent=1 // pred_check
      _
    $region39: #{tpu_custom_call.1} parent=1 // pred_check_branch
      %38 = sbr.rel (0) target = $region41
    $region40: #{tpu_custom_call.1} parent=1 // pred_region
      _
    $region41: #{tpu_custom_call.1} parent=1 // pred_fallthru
      _
    // Predicated region
    $region42: #{tpu_custom_call.1} parent=1 // pred_check
      _
    $region43: #{tpu_custom_call.1} parent=1 // pred_check_branch
      %40 = sbr.rel (0) target = $region45
    $region44: #{tpu_custom_call.1} parent=1 // pred_region
      _
    $region45: #{tpu_custom_call.1} parent=1 // pred_fallthru
      _
    // Predicated region
    $region46: #{tpu_custom_call.1} parent=1 // pred_check
      _
    $region47: #{tpu_custom_call.1} parent=1 // pred_check_branch
      %42 = sbr.rel (0) target = $region49
    $region48: #{tpu_custom_call.1} parent=1 // pred_region
      _
    $region49: #{tpu_custom_call.1} parent=1 // pred_fallthru
      _
    // Predicated region
    $region50: #{tpu_custom_call.1} parent=1 // pred_check
      _
    $region51: #{tpu_custom_call.1} parent=1 // pred_check_branch
      %44 = sbr.rel (0) target = $region53
    $region52: #{tpu_custom_call.1} parent=1 // pred_region
      _
    $region53: #{tpu_custom_call.1} parent=1 // pred_fallthru
      _
    %v45 = vld [vmem:[%s0] sm:$0x3]
    %v46 = vld [vmem:[%s1] sm:$0xff]
    %v47 = vld [vmem:[%s1 + $0x8] sm:$0xff]
    %v48 = vld [vmem:[%s1 + $0x10] sm:$0xff]
    %v49 = vld [vmem:[%s1 + $0x18] sm:$0xff]
    %v50 = vld [vmem:[%s1 + $0x20] sm:$0xff]
    %v51 = vld [vmem:[%s1 + $0x28] sm:$0xff]
    %v52 = vld [vmem:[%s1 + $0x30] sm:$0xff]
    %v53 = vld [vmem:[%s1 + $0x38] sm:$0xff]
    %v54 = vld [vmem:[%s2] sm:$0x1]
    %v56 = vlaneseq
    %v57 = vshrl.u32 %v56, 7
    %v58 = vsub.s32 0, %v57
    %v59 = vrot.slane %v54, %v58
    %vm61 = vcmask 523264
    %v63 = vsel %vm61, %v45, 0
    %65 = vmatprep.subr.mxu0 0.0
    %66 = vmatpush1.msra.mxu0 %v46
    %67 = vmatprep.subr.mxu0 0.0
    %68 = vmatpush1.msra.mxu0 %v47
    %69 = vmatprep.subr.mxu0 0.0
    %70 = vmatpush1.msra.mxu0 %v48
    %71 = vmatprep.subr.mxu0 0.0
    %72 = vmatpush1.msra.mxu0 %v49
    %73 = vmatprep.subr.mxu0 0.0
    %74 = vmatpush1.msra.mxu0 %v50
    %75 = vmatprep.subr.mxu0 0.0
    %76 = vmatpush1.msra.mxu0 %v51
    %77 = vmatprep.subr.mxu0 0.0
    %78 = vmatpush1.msra.mxu0 %v52
    %79 = vmatprep.subr.mxu0 0.0
    %80 = vmatpush1.msra.mxu0 %v53
    %81 = vmatprep.subr.mxu0 0.0
    %82 = vmatpush1.msra.mxu0 0.0
    %83 = vmatprep.subr.mxu0 0.0
    %84 = vmatpush1.msra.mxu0 0.0
    %85 = vmatprep.subr.mxu0 0.0
    %86 = vmatpush1.msra.mxu0 0.0
    %87 = vmatprep.subr.mxu0 0.0
    %88 = vmatpush1.msra.mxu0 0.0
    %89 = vmatprep.subr.mxu0 0.0
    %90 = vmatpush1.msra.mxu0 0.0
    %91 = vmatprep.subr.mxu0 0.0
    %92 = vmatpush1.msra.mxu0 0.0
    %93 = vmatprep.subr.mxu0 0.0
    %94 = vmatpush1.msra.mxu0 0.0
    %95 = vmatprep.subr.mxu0 0.0
    %96 = vmatpush1.msra.mxu0 0.0
    %97 = vmatprep.subr.mxu0 0.0
    %98 = vmatpush1.msra.mxu0 0.0
    %99 = vmatprep.subr.mxu0 0.0
    %100 = vmatpush1.msra.mxu0 0.0
    %101 = vmatprep.subr.mxu0 0.0
    %102 = vmatpush1.msra.mxu0 0.0
    %103 = vmatprep.subr.mxu0 0.0
    %104 = vmatpush1.msra.mxu0 0.0
    %105 = vmatprep.subr.mxu0 0.0
    %106 = vmatpush1.msra.mxu0 0.0
    %107 = vmatprep.subr.mxu0 0.0
    %108 = vmatpush1.msra.mxu0 0.0
    %109 = vmatprep.subr.mxu0 0.0
    %110 = vmatpush1.msra.mxu0 0.0
    %111 = vmatprep.subr.mxu0 0.0
    %112 = vmatpush1.msra.mxu0 0.0
    %113 = vmatprep.subr.mxu0 0.0
    %114 = vmatpush1.msra.mxu0 0.0
    %115 = vmatprep.subr.mxu0 0.0
    %116 = vmatpush1.msra.mxu0 0.0
    %117 = vmatprep.subr.mxu0 0.0
    %118 = vmatpush1.msra.mxu0 0.0
    %119 = vmatprep.subr.mxu0 0.0
    %120 = vmatpush1.msra.mxu0 0.0
    %121 = vmatprep.subr.mxu0 0.0
    %122 = vmatpush1.msra.mxu0 0.0
    %123 = vmatprep.subr.mxu0 0.0
    %124 = vmatpush1.msra.mxu0 0.0
    %125 = vmatprep.subr.mxu0 0.0
    %126 = vmatpush1.msra.mxu0 0.0
    %127 = vmatprep.subr.mxu0 0.0
    %128 = vmatpush1.msra.mxu0 0.0
    %129 = vmatprep.mubr.f32.mxu0 0.0
    %130 = vmatmul.mubr.f32.gmra.mrb[0].mxu0 %v63
    %v131 = vpop.f32.mrb[0].mxu0
    %v132 = vadd.f32 %v59, %v131
    %v133 = vpop.f32.mrb[0].mxu0
    %134 = vdwg.mxu0
    %v135 = vtanh.pop %v132
    %v136 = vld [vmem:[%s5] sm:$0xff]
    %v137 = vld [vmem:[%s5 + $0x8] sm:$0xff]
    %v138 = vld [vmem:[%s3] sm:$0xff]
    %v139 = vld [vmem:[%s3 + $0x8] sm:$0xff]
    %v140 = vld [vmem:[%s4] sm:$0xff]
    %v141 = vld [vmem:[%s4 + $0x8] sm:$0xff]
    %v142 = vld [vmem:[%s4 + $0x10] sm:$0xff]
    %v143 = vld [vmem:[%s4 + $0x18] sm:$0xff]
    %v144 = vld [vmem:[%s4 + $0x20] sm:$0xff]
    %v145 = vld [vmem:[%s4 + $0x28] sm:$0xff]
    %v146 = vld [vmem:[%s4 + $0x30] sm:$0xff]
    %v147 = vld [vmem:[%s4 + $0x38] sm:$0xff]
    %149 = vset.pattern.permute.xlu0 0
    %150 = vperm.xlu0 %149, %v136
    %v151 = vpop.permute.xlu0 %150
    %154 = vset.pattern.permute.xlu0 0
    %155 = vperm.xlu0 %154, %v137
    %v156 = vpop.permute.xlu0 %155
    %v158 = vmul.f32 %v138, %v151
    %v159 = vmul.f32 %v139, %v156
    %v160 = vld [vmem:[%s6] sm:$0xf]
    %v163 = vunpack.c.l.s4 1966171168
    %v164 = vunpack.c.0.s8 %v163
    %v165 = vlaneseq
    %v166 = vshrl.u32 %v165, 7
    %v167 = vsub.s32 %v164, %v166
    %v168 = vrot.slane %v160, %v167
    %v169 = vcombine.high %v168, %v168
    %v171 = vunpack.c.l.s4 1966171168
    %v172 = vunpack.c.0.s8 %v171
    %v173 = vlaneseq
    %v174 = vshrl.u32 %v173, 7
    %v175 = vsub.s32 %v172, %v174
    %v176 = vrot.slane %v168, %v175
    %v178 = vunpack.c.l.s4 1966171168
    %v179 = vunpack.c.0.s8 %v178
    %v180 = vlaneseq
    %v181 = vshrl.u32 %v180, 7
    %v182 = vsub.s32 %v179, %v181
    %v183 = vrot.slane %v169, %v182
    %v184 = vcombine.high %v176, %v176
    %v185 = vcombine.high %v183, %v183
    %v186 = vlaneseq
    %v187 = vshrl.u32 %v186, 7
    %v188 = vsub.s32 0, %v187
    %v189 = vrot.slane %v176, %v188
    %v190 = vlaneseq
    %v191 = vshrl.u32 %v190, 7
    %v192 = vsub.s32 0, %v191
    %v193 = vrot.slane %v183, %v192
    %v194 = vlaneseq
    %v195 = vshrl.u32 %v194, 7
    %v196 = vsub.s32 0, %v195
    %v197 = vrot.slane %v184, %v196
    %v198 = vlaneseq
    %v199 = vshrl.u32 %v198, 7
    %v200 = vsub.s32 0, %v199
    %v201 = vrot.slane %v185, %v200
    %v206 = vmul.f32 %v158, %v189
    %v207 = vmul.f32 %v158, %v193
    %v208 = vmul.f32 %v158, %v197
    %v209 = vmul.f32 %v158, %v201
    %v210 = vmul.f32 %v159, %v189
    %v211 = vmul.f32 %v159, %v193
    %v212 = vmul.f32 %v159, %v197
    %v213 = vmul.f32 %v159, %v201
    %v215 = vunpack.c.l.s4 1966171168
    %v216 = vunpack.c.0.s8 %v215
    %v217 = vlaneseq
    %v218 = vshrl.u32 %v217, 7
    %v219 = vsub.s32 %v216, %v218
    %v220 = vrot.slane %v136, %v219
    %v221 = vcombine.high %v220, %v220
    %v223 = vunpack.c.l.s4 1966171168
    %v224 = vunpack.c.0.s8 %v223
    %v225 = vlaneseq
    %v226 = vshrl.u32 %v225, 7
    %v227 = vsub.s32 %v224, %v226
    %v228 = vrot.slane %v220, %v227
    %v230 = vunpack.c.l.s4 1966171168
    %v231 = vunpack.c.0.s8 %v230
    %v232 = vlaneseq
    %v233 = vshrl.u32 %v232, 7
    %v234 = vsub.s32 %v231, %v233
    %v235 = vrot.slane %v221, %v234
    %v236 = vcombine.high %v228, %v228
    %v237 = vcombine.high %v235, %v235
    %v239 = vunpack.c.l.s4 1966171168
    %v240 = vunpack.c.0.s8 %v239
    %v241 = vlaneseq
    %v242 = vshrl.u32 %v241, 7
    %v243 = vsub.s32 %v240, %v242
    %v244 = vrot.slane %v137, %v243
    %v245 = vcombine.high %v244, %v244
    %v247 = vunpack.c.l.s4 1966171168
    %v248 = vunpack.c.0.s8 %v247
    %v249 = vlaneseq
    %v250 = vshrl.u32 %v249, 7
    %v251 = vsub.s32 %v248, %v250
    %v252 = vrot.slane %v244, %v251
    %v254 = vunpack.c.l.s4 1966171168
    %v255 = vunpack.c.0.s8 %v254
    %v256 = vlaneseq
    %v257 = vshrl.u32 %v256, 7
    %v258 = vsub.s32 %v255, %v257
    %v259 = vrot.slane %v245, %v258
    %v260 = vcombine.high %v252, %v252
    %v261 = vcombine.high %v259, %v259
    %v262 = vlaneseq
    %v263 = vshrl.u32 %v262, 7
    %v264 = vsub.s32 0, %v263
    %v265 = vrot.slane %v228, %v264
    %v266 = vlaneseq
    %v267 = vshrl.u32 %v266, 7
    %v268 = vsub.s32 0, %v267
    %v269 = vrot.slane %v235, %v268
    %v270 = vlaneseq
    %v271 = vshrl.u32 %v270, 7
    %v272 = vsub.s32 0, %v271
    %v273 = vrot.slane %v236, %v272
    %v274 = vlaneseq
    %v275 = vshrl.u32 %v274, 7
    %v276 = vsub.s32 0, %v275
    %v277 = vrot.slane %v237, %v276
    %v278 = vlaneseq
    %v279 = vshrl.u32 %v278, 7
    %v280 = vsub.s32 0, %v279
    %v281 = vrot.slane %v252, %v280
    %v282 = vlaneseq
    %v283 = vshrl.u32 %v282, 7
    %v284 = vsub.s32 0, %v283
    %v285 = vrot.slane %v259, %v284
    %v286 = vlaneseq
    %v287 = vshrl.u32 %v286, 7
    %v288 = vsub.s32 0, %v287
    %v289 = vrot.slane %v260, %v288
    %v290 = vlaneseq
    %v291 = vshrl.u32 %v290, 7
    %v292 = vsub.s32 0, %v291
    %v293 = vrot.slane %v261, %v292
    %294 = vset.pattern.permute.xlu0 2
    %295 = vperm.xlu0 %294, %v265
    %v296 = vpop.permute.xlu0 %295
    %298 = vset.pattern.permute.xlu0 2
    %299 = vperm.xlu0 %298, %v269
    %v300 = vpop.permute.xlu0 %299
    %302 = vset.pattern.permute.xlu0 2
    %303 = vperm.xlu0 %302, %v273
    %v304 = vpop.permute.xlu0 %303
    %306 = vset.pattern.permute.xlu0 2
    %307 = vperm.xlu0 %306, %v277
    %v308 = vpop.permute.xlu0 %307
    %310 = vset.pattern.permute.xlu0 2
    %311 = vperm.xlu0 %310, %v281
    %v312 = vpop.permute.xlu0 %311
    %314 = vset.pattern.permute.xlu0 2
    %315 = vperm.xlu0 %314, %v285
    %v316 = vpop.permute.xlu0 %315
    %318 = vset.pattern.permute.xlu0 2
    %319 = vperm.xlu0 %318, %v289
    %v320 = vpop.permute.xlu0 %319
    %322 = vset.pattern.permute.xlu0 2
    %323 = vperm.xlu0 %322, %v293
    %v324 = vpop.permute.xlu0 %323
    %v326 = vmul.f32 %v206, %v296
    %v327 = vmul.f32 %v207, %v300
    %v328 = vmul.f32 %v208, %v304
    %v329 = vmul.f32 %v209, %v308
    %v330 = vmul.f32 %v210, %v312
    %v331 = vmul.f32 %v211, %v316
    %v332 = vmul.f32 %v212, %v320
    %v333 = vmul.f32 %v213, %v324
    %vm334 = vcmask 64512
    %v336 = vsel %vm334, %v140, 0
    %338 = vmatprep.subr.mxu0 0.0
    %339 = vmatpush1.msra.mxu0 %v326
    %340 = vmatprep.subr.mxu0 0.0
    %341 = vmatpush1.msra.mxu0 0.0
    %342 = vmatprep.subr.mxu0 0.0
    %343 = vmatpush1.msra.mxu0 0.0
    %344 = vmatprep.subr.mxu0 0.0
    %345 = vmatpush1.msra.mxu0 0.0
    %346 = vmatprep.subr.mxu0 0.0
    %347 = vmatpush1.msra.mxu0 0.0
    %348 = vmatprep.subr.mxu0 0.0
    %349 = vmatpush1.msra.mxu0 0.0
    %350 = vmatprep.subr.mxu0 0.0
    %351 = vmatpush1.msra.mxu0 0.0
    %352 = vmatprep.subr.mxu0 0.0
    %353 = vmatpush1.msra.mxu0 0.0
    %354 = vmatprep.subr.mxu0 0.0
    %355 = vmatpush1.msra.mxu0 0.0
    %356 = vmatprep.subr.mxu0 0.0
    %357 = vmatpush1.msra.mxu0 0.0
    %358 = vmatprep.subr.mxu0 0.0
    %359 = vmatpush1.msra.mxu0 0.0
    %360 = vmatprep.subr.mxu0 0.0
    %361 = vmatpush1.msra.mxu0 0.0
    %362 = vmatprep.subr.mxu0 0.0
    %363 = vmatpush1.msra.mxu0 0.0
    %364 = vmatprep.subr.mxu0 0.0
    %365 = vmatpush1.msra.mxu0 0.0
    %366 = vmatprep.subr.mxu0 0.0
    %367 = vmatpush1.msra.mxu0 0.0
    %368 = vmatprep.subr.mxu0 0.0
    %369 = vmatpush1.msra.mxu0 0.0
    %370 = vmatprep.subr.mxu0 0.0
    %371 = vmatpush1.msra.mxu0 0.0
    %372 = vmatprep.subr.mxu0 0.0
    %373 = vmatpush1.msra.mxu0 0.0
    %374 = vmatprep.subr.mxu0 0.0
    %375 = vmatpush1.msra.mxu0 0.0
    %376 = vmatprep.subr.mxu0 0.0
    %377 = vmatpush1.msra.mxu0 0.0
    %378 = vmatprep.subr.mxu0 0.0
    %379 = vmatpush1.msra.mxu0 0.0
    %380 = vmatprep.subr.mxu0 0.0
    %381 = vmatpush1.msra.mxu0 0.0
    %382 = vmatprep.subr.mxu0 0.0
    %383 = vmatpush1.msra.mxu0 0.0
    %384 = vmatprep.subr.mxu0 0.0
    %385 = vmatpush1.msra.mxu0 0.0
    %386 = vmatprep.subr.mxu0 0.0
    %387 = vmatpush1.msra.mxu0 0.0
    %388 = vmatprep.subr.mxu0 0.0
    %389 = vmatpush1.msra.mxu0 0.0
    %390 = vmatprep.subr.mxu0 0.0
    %391 = vmatpush1.msra.mxu0 0.0
    %392 = vmatprep.subr.mxu0 0.0
    %393 = vmatpush1.msra.mxu0 0.0
    %394 = vmatprep.subr.mxu0 0.0
    %395 = vmatpush1.msra.mxu0 0.0
    %396 = vmatprep.subr.mxu0 0.0
    %397 = vmatpush1.msra.mxu0 0.0
    %398 = vmatprep.subr.mxu0 0.0
    %399 = vmatpush1.msra.mxu0 0.0
    %400 = vmatprep.subr.mxu0 0.0
    %401 = vmatpush1.msra.mxu0 0.0
    %402 = vmatprep.mubr.f32.mxu0 0.0
    %403 = vmatmul.mubr.f32.gmra.mrb[0].mxu0 %v336
    %v404 = vpop.f32.mrb[0].mxu0
    %v405 = vadd.f32 0.0, %v404
    %v406 = vpop.f32.mrb[0].mxu0
    %407 = vdwg.mxu0
    %v409 = vsel %vm334, %v141, 0
    %411 = vmatprep.subr.mxu0 0.0
    %412 = vmatpush1.msra.mxu0 %v327
    %413 = vmatprep.subr.mxu0 0.0
    %414 = vmatpush1.msra.mxu0 0.0
    %415 = vmatprep.subr.mxu0 0.0
    %416 = vmatpush1.msra.mxu0 0.0
    %417 = vmatprep.subr.mxu0 0.0
    %418 = vmatpush1.msra.mxu0 0.0
    %419 = vmatprep.subr.mxu0 0.0
    %420 = vmatpush1.msra.mxu0 0.0
    %421 = vmatprep.subr.mxu0 0.0
    %422 = vmatpush1.msra.mxu0 0.0
    %423 = vmatprep.subr.mxu0 0.0
    %424 = vmatpush1.msra.mxu0 0.0
    %425 = vmatprep.subr.mxu0 0.0
    %426 = vmatpush1.msra.mxu0 0.0
    %427 = vmatprep.subr.mxu0 0.0
    %428 = vmatpush1.msra.mxu0 0.0
    %429 = vmatprep.subr.mxu0 0.0
    %430 = vmatpush1.msra.mxu0 0.0
    %431 = vmatprep.subr.mxu0 0.0
    %432 = vmatpush1.msra.mxu0 0.0
    %433 = vmatprep.subr.mxu0 0.0
    %434 = vmatpush1.msra.mxu0 0.0
    %435 = vmatprep.subr.mxu0 0.0
    %436 = vmatpush1.msra.mxu0 0.0
    %437 = vmatprep.subr.mxu0 0.0
    %438 = vmatpush1.msra.mxu0 0.0
    %439 = vmatprep.subr.mxu0 0.0
    %440 = vmatpush1.msra.mxu0 0.0
    %441 = vmatprep.subr.mxu0 0.0
    %442 = vmatpush1.msra.mxu0 0.0
    %443 = vmatprep.subr.mxu0 0.0
    %444 = vmatpush1.msra.mxu0 0.0
    %445 = vmatprep.subr.mxu0 0.0
    %446 = vmatpush1.msra.mxu0 0.0
    %447 = vmatprep.subr.mxu0 0.0
    %448 = vmatpush1.msra.mxu0 0.0
    %449 = vmatprep.subr.mxu0 0.0
    %450 = vmatpush1.msra.mxu0 0.0
    %451 = vmatprep.subr.mxu0 0.0
    %452 = vmatpush1.msra.mxu0 0.0
    %453 = vmatprep.subr.mxu0 0.0
    %454 = vmatpush1.msra.mxu0 0.0
    %455 = vmatprep.subr.mxu0 0.0
    %456 = vmatpush1.msra.mxu0 0.0
    %457 = vmatprep.subr.mxu0 0.0
    %458 = vmatpush1.msra.mxu0 0.0
    %459 = vmatprep.subr.mxu0 0.0
    %460 = vmatpush1.msra.mxu0 0.0
    %461 = vmatprep.subr.mxu0 0.0
    %462 = vmatpush1.msra.mxu0 0.0
    %463 = vmatprep.subr.mxu0 0.0
    %464 = vmatpush1.msra.mxu0 0.0
    %465 = vmatprep.subr.mxu0 0.0
    %466 = vmatpush1.msra.mxu0 0.0
    %467 = vmatprep.subr.mxu0 0.0
    %468 = vmatpush1.msra.mxu0 0.0
    %469 = vmatprep.subr.mxu0 0.0
    %470 = vmatpush1.msra.mxu0 0.0
    %471 = vmatprep.subr.mxu0 0.0
    %472 = vmatpush1.msra.mxu0 0.0
    %473 = vmatprep.subr.mxu0 0.0
    %474 = vmatpush1.msra.mxu0 0.0
    %475 = vmatprep.mubr.f32.mxu0 0.0
    %476 = vmatmul.mubr.f32.gmra.mrb[0].mxu0 %v409
    %v477 = vpop.f32.mrb[0].mxu0
    %v478 = vadd.f32 0.0, %v477
    %v479 = vpop.f32.mrb[0].mxu0
    %480 = vdwg.mxu0
    %v482 = vsel %vm334, %v142, 0
    %484 = vmatprep.subr.mxu0 0.0
    %485 = vmatpush1.msra.mxu0 %v328
    %486 = vmatprep.subr.mxu0 0.0
    %487 = vmatpush1.msra.mxu0 0.0
    %488 = vmatprep.subr.mxu0 0.0
    %489 = vmatpush1.msra.mxu0 0.0
    %490 = vmatprep.subr.mxu0 0.0
    %491 = vmatpush1.msra.mxu0 0.0
    %492 = vmatprep.subr.mxu0 0.0
    %493 = vmatpush1.msra.mxu0 0.0
    %494 = vmatprep.subr.mxu0 0.0
    %495 = vmatpush1.msra.mxu0 0.0
    %496 = vmatprep.subr.mxu0 0.0
    %497 = vmatpush1.msra.mxu0 0.0
    %498 = vmatprep.subr.mxu0 0.0
    %499 = vmatpush1.msra.mxu0 0.0
    %500 = vmatprep.subr.mxu0 0.0
    %501 = vmatpush1.msra.mxu0 0.0
    %502 = vmatprep.subr.mxu0 0.0
    %503 = vmatpush1.msra.mxu0 0.0
    %504 = vmatprep.subr.mxu0 0.0
    %505 = vmatpush1.msra.mxu0 0.0
    %506 = vmatprep.subr.mxu0 0.0
    %507 = vmatpush1.msra.mxu0 0.0
    %508 = vmatprep.subr.mxu0 0.0
    %509 = vmatpush1.msra.mxu0 0.0
    %510 = vmatprep.subr.mxu0 0.0
    %511 = vmatpush1.msra.mxu0 0.0
    %512 = vmatprep.subr.mxu0 0.0
    %513 = vmatpush1.msra.mxu0 0.0
    %514 = vmatprep.subr.mxu0 0.0
    %515 = vmatpush1.msra.mxu0 0.0
    %516 = vmatprep.subr.mxu0 0.0
    %517 = vmatpush1.msra.mxu0 0.0
    %518 = vmatprep.subr.mxu0 0.0
    %519 = vmatpush1.msra.mxu0 0.0
    %520 = vmatprep.subr.mxu0 0.0
    %521 = vmatpush1.msra.mxu0 0.0
    %522 = vmatprep.subr.mxu0 0.0
    %523 = vmatpush1.msra.mxu0 0.0
    %524 = vmatprep.subr.mxu0 0.0
    %525 = vmatpush1.msra.mxu0 0.0
    %526 = vmatprep.subr.mxu0 0.0
    %527 = vmatpush1.msra.mxu0 0.0
    %528 = vmatprep.subr.mxu0 0.0
    %529 = vmatpush1.msra.mxu0 0.0
    %530 = vmatprep.subr.mxu0 0.0
    %531 = vmatpush1.msra.mxu0 0.0
    %532 = vmatprep.subr.mxu0 0.0
    %533 = vmatpush1.msra.mxu0 0.0
    %534 = vmatprep.subr.mxu0 0.0
    %535 = vmatpush1.msra.mxu0 0.0
    %536 = vmatprep.subr.mxu0 0.0
    %537 = vmatpush1.msra.mxu0 0.0
    %538 = vmatprep.subr.mxu0 0.0
    %539 = vmatpush1.msra.mxu0 0.0
    %540 = vmatprep.subr.mxu0 0.0
    %541 = vmatpush1.msra.mxu0 0.0
    %542 = vmatprep.subr.mxu0 0.0
    %543 = vmatpush1.msra.mxu0 0.0
    %544 = vmatprep.subr.mxu0 0.0
    %545 = vmatpush1.msra.mxu0 0.0
    %546 = vmatprep.subr.mxu0 0.0
    %547 = vmatpush1.msra.mxu0 0.0
    %548 = vmatprep.mubr.f32.mxu0 0.0
    %549 = vmatmul.mubr.f32.gmra.mrb[0].mxu0 %v482
    %v550 = vpop.f32.mrb[0].mxu0
    %v551 = vadd.f32 0.0, %v550
    %v552 = vpop.f32.mrb[0].mxu0
    %553 = vdwg.mxu0
    %v555 = vsel %vm334, %v143, 0
    %557 = vmatprep.subr.mxu0 0.0
    %558 = vmatpush1.msra.mxu0 %v329
    %559 = vmatprep.subr.mxu0 0.0
    %560 = vmatpush1.msra.mxu0 0.0
    %561 = vmatprep.subr.mxu0 0.0
    %562 = vmatpush1.msra.mxu0 0.0
    %563 = vmatprep.subr.mxu0 0.0
    %564 = vmatpush1.msra.mxu0 0.0
    %565 = vmatprep.subr.mxu0 0.0
    %566 = vmatpush1.msra.mxu0 0.0
    %567 = vmatprep.subr.mxu0 0.0
    %568 = vmatpush1.msra.mxu0 0.0
    %569 = vmatprep.subr.mxu0 0.0
    %570 = vmatpush1.msra.mxu0 0.0
    %571 = vmatprep.subr.mxu0 0.0
    %572 = vmatpush1.msra.mxu0 0.0
    %573 = vmatprep.subr.mxu0 0.0
    %574 = vmatpush1.msra.mxu0 0.0
    %575 = vmatprep.subr.mxu0 0.0
    %576 = vmatpush1.msra.mxu0 0.0
    %577 = vmatprep.subr.mxu0 0.0
    %578 = vmatpush1.msra.mxu0 0.0
    %579 = vmatprep.subr.mxu0 0.0
    %580 = vmatpush1.msra.mxu0 0.0
    %581 = vmatprep.subr.mxu0 0.0
    %582 = vmatpush1.msra.mxu0 0.0
    %583 = vmatprep.subr.mxu0 0.0
    %584 = vmatpush1.msra.mxu0 0.0
    %585 = vmatprep.subr.mxu0 0.0
    %586 = vmatpush1.msra.mxu0 0.0
    %587 = vmatprep.subr.mxu0 0.0
    %588 = vmatpush1.msra.mxu0 0.0
    %589 = vmatprep.subr.mxu0 0.0
    %590 = vmatpush1.msra.mxu0 0.0
    %591 = vmatprep.subr.mxu0 0.0
    %592 = vmatpush1.msra.mxu0 0.0
    %593 = vmatprep.subr.mxu0 0.0
    %594 = vmatpush1.msra.mxu0 0.0
    %595 = vmatprep.subr.mxu0 0.0
    %596 = vmatpush1.msra.mxu0 0.0
    %597 = vmatprep.subr.mxu0 0.0
    %598 = vmatpush1.msra.mxu0 0.0
    %599 = vmatprep.subr.mxu0 0.0
    %600 = vmatpush1.msra.mxu0 0.0
    %601 = vmatprep.subr.mxu0 0.0
    %602 = vmatpush1.msra.mxu0 0.0
    %603 = vmatprep.subr.mxu0 0.0
    %604 = vmatpush1.msra.mxu0 0.0
    %605 = vmatprep.subr.mxu0 0.0
    %606 = vmatpush1.msra.mxu0 0.0
    %607 = vmatprep.subr.mxu0 0.0
    %608 = vmatpush1.msra.mxu0 0.0
    %609 = vmatprep.subr.mxu0 0.0
    %610 = vmatpush1.msra.mxu0 0.0
    %611 = vmatprep.subr.mxu0 0.0
    %612 = vmatpush1.msra.mxu0 0.0
    %613 = vmatprep.subr.mxu0 0.0
    %614 = vmatpush1.msra.mxu0 0.0
    %615 = vmatprep.subr.mxu0 0.0
    %616 = vmatpush1.msra.mxu0 0.0
    %617 = vmatprep.subr.mxu0 0.0
    %618 = vmatpush1.msra.mxu0 0.0
    %619 = vmatprep.subr.mxu0 0.0
    %620 = vmatpush1.msra.mxu0 0.0
    %621 = vmatprep.mubr.f32.mxu0 0.0
    %622 = vmatmul.mubr.f32.gmra.mrb[0].mxu0 %v555
    %v623 = vpop.f32.mrb[0].mxu0
    %v624 = vadd.f32 0.0, %v623
    %v625 = vpop.f32.mrb[0].mxu0
    %626 = vdwg.mxu0
    %v628 = vsel %vm334, %v144, 0
    %630 = vmatprep.subr.mxu0 0.0
    %631 = vmatpush1.msra.mxu0 %v330
    %632 = vmatprep.subr.mxu0 0.0
    %633 = vmatpush1.msra.mxu0 0.0
    %634 = vmatprep.subr.mxu0 0.0
    %635 = vmatpush1.msra.mxu0 0.0
    %636 = vmatprep.subr.mxu0 0.0
    %637 = vmatpush1.msra.mxu0 0.0
    %638 = vmatprep.subr.mxu0 0.0
    %639 = vmatpush1.msra.mxu0 0.0
    %640 = vmatprep.subr.mxu0 0.0
    %641 = vmatpush1.msra.mxu0 0.0
    %642 = vmatprep.subr.mxu0 0.0
    %643 = vmatpush1.msra.mxu0 0.0
    %644 = vmatprep.subr.mxu0 0.0
    %645 = vmatpush1.msra.mxu0 0.0
    %646 = vmatprep.subr.mxu0 0.0
    %647 = vmatpush1.msra.mxu0 0.0
    %648 = vmatprep.subr.mxu0 0.0
    %649 = vmatpush1.msra.mxu0 0.0
    %650 = vmatprep.subr.mxu0 0.0
    %651 = vmatpush1.msra.mxu0 0.0
    %652 = vmatprep.subr.mxu0 0.0
    %653 = vmatpush1.msra.mxu0 0.0
    %654 = vmatprep.subr.mxu0 0.0
    %655 = vmatpush1.msra.mxu0 0.0
    %656 = vmatprep.subr.mxu0 0.0
    %657 = vmatpush1.msra.mxu0 0.0
    %658 = vmatprep.subr.mxu0 0.0
    %659 = vmatpush1.msra.mxu0 0.0
    %660 = vmatprep.subr.mxu0 0.0
    %661 = vmatpush1.msra.mxu0 0.0
    %662 = vmatprep.subr.mxu0 0.0
    %663 = vmatpush1.msra.mxu0 0.0
    %664 = vmatprep.subr.mxu0 0.0
    %665 = vmatpush1.msra.mxu0 0.0
    %666 = vmatprep.subr.mxu0 0.0
    %667 = vmatpush1.msra.mxu0 0.0
    %668 = vmatprep.subr.mxu0 0.0
    %669 = vmatpush1.msra.mxu0 0.0
    %670 = vmatprep.subr.mxu0 0.0
    %671 = vmatpush1.msra.mxu0 0.0
    %672 = vmatprep.subr.mxu0 0.0
    %673 = vmatpush1.msra.mxu0 0.0
    %674 = vmatprep.subr.mxu0 0.0
    %675 = vmatpush1.msra.mxu0 0.0
    %676 = vmatprep.subr.mxu0 0.0
    %677 = vmatpush1.msra.mxu0 0.0
    %678 = vmatprep.subr.mxu0 0.0
    %679 = vmatpush1.msra.mxu0 0.0
    %680 = vmatprep.subr.mxu0 0.0
    %681 = vmatpush1.msra.mxu0 0.0
    %682 = vmatprep.subr.mxu0 0.0
    %683 = vmatpush1.msra.mxu0 0.0
    %684 = vmatprep.subr.mxu0 0.0
    %685 = vmatpush1.msra.mxu0 0.0
    %686 = vmatprep.subr.mxu0 0.0
    %687 = vmatpush1.msra.mxu0 0.0
    %688 = vmatprep.subr.mxu0 0.0
    %689 = vmatpush1.msra.mxu0 0.0
    %690 = vmatprep.subr.mxu0 0.0
    %691 = vmatpush1.msra.mxu0 0.0
    %692 = vmatprep.subr.mxu0 0.0
    %693 = vmatpush1.msra.mxu0 0.0
    %694 = vmatprep.mubr.f32.mxu0 0.0
    %695 = vmatmul.mubr.f32.gmra.mrb[0].mxu0 %v628
    %v696 = vpop.f32.mrb[0].mxu0
    %v697 = vadd.f32 0.0, %v696
    %v698 = vpop.f32.mrb[0].mxu0
    %699 = vdwg.mxu0
    %v701 = vsel %vm334, %v145, 0
    %703 = vmatprep.subr.mxu0 0.0
    %704 = vmatpush1.msra.mxu0 %v331
    %705 = vmatprep.subr.mxu0 0.0
    %706 = vmatpush1.msra.mxu0 0.0
    %707 = vmatprep.subr.mxu0 0.0
    %708 = vmatpush1.msra.mxu0 0.0
    %709 = vmatprep.subr.mxu0 0.0
    %710 = vmatpush1.msra.mxu0 0.0
    %711 = vmatprep.subr.mxu0 0.0
    %712 = vmatpush1.msra.mxu0 0.0
    %713 = vmatprep.subr.mxu0 0.0
    %714 = vmatpush1.msra.mxu0 0.0
    %715 = vmatprep.subr.mxu0 0.0
    %716 = vmatpush1.msra.mxu0 0.0
    %717 = vmatprep.subr.mxu0 0.0
    %718 = vmatpush1.msra.mxu0 0.0
    %719 = vmatprep.subr.mxu0 0.0
    %720 = vmatpush1.msra.mxu0 0.0
    %721 = vmatprep.subr.mxu0 0.0
    %722 = vmatpush1.msra.mxu0 0.0
    %723 = vmatprep.subr.mxu0 0.0
    %724 = vmatpush1.msra.mxu0 0.0
    %725 = vmatprep.subr.mxu0 0.0
    %726 = vmatpush1.msra.mxu0 0.0
    %727 = vmatprep.subr.mxu0 0.0
    %728 = vmatpush1.msra.mxu0 0.0
    %729 = vmatprep.subr.mxu0 0.0
    %730 = vmatpush1.msra.mxu0 0.0
    %731 = vmatprep.subr.mxu0 0.0
    %732 = vmatpush1.msra.mxu0 0.0
    %733 = vmatprep.subr.mxu0 0.0
    %734 = vmatpush1.msra.mxu0 0.0
    %735 = vmatprep.subr.mxu0 0.0
    %736 = vmatpush1.msra.mxu0 0.0
    %737 = vmatprep.subr.mxu0 0.0
    %738 = vmatpush1.msra.mxu0 0.0
    %739 = vmatprep.subr.mxu0 0.0
    %740 = vmatpush1.msra.mxu0 0.0
    %741 = vmatprep.subr.mxu0 0.0
    %742 = vmatpush1.msra.mxu0 0.0
    %743 = vmatprep.subr.mxu0 0.0
    %744 = vmatpush1.msra.mxu0 0.0
    %745 = vmatprep.subr.mxu0 0.0
    %746 = vmatpush1.msra.mxu0 0.0
    %747 = vmatprep.subr.mxu0 0.0
    %748 = vmatpush1.msra.mxu0 0.0
    %749 = vmatprep.subr.mxu0 0.0
    %750 = vmatpush1.msra.mxu0 0.0
    %751 = vmatprep.subr.mxu0 0.0
    %752 = vmatpush1.msra.mxu0 0.0
    %753 = vmatprep.subr.mxu0 0.0
    %754 = vmatpush1.msra.mxu0 0.0
    %755 = vmatprep.subr.mxu0 0.0
    %756 = vmatpush1.msra.mxu0 0.0
    %757 = vmatprep.subr.mxu0 0.0
    %758 = vmatpush1.msra.mxu0 0.0
    %759 = vmatprep.subr.mxu0 0.0
    %760 = vmatpush1.msra.mxu0 0.0
    %761 = vmatprep.subr.mxu0 0.0
    %762 = vmatpush1.msra.mxu0 0.0
    %763 = vmatprep.subr.mxu0 0.0
    %764 = vmatpush1.msra.mxu0 0.0
    %765 = vmatprep.subr.mxu0 0.0
    %766 = vmatpush1.msra.mxu0 0.0
    %767 = vmatprep.mubr.f32.mxu0 0.0
    %768 = vmatmul.mubr.f32.gmra.mrb[0].mxu0 %v701
    %v769 = vpop.f32.mrb[0].mxu0
    %v770 = vadd.f32 0.0, %v769
    %v771 = vpop.f32.mrb[0].mxu0
    %772 = vdwg.mxu0
    %v774 = vsel %vm334, %v146, 0
    %776 = vmatprep.subr.mxu0 0.0
    %777 = vmatpush1.msra.mxu0 %v332
    %778 = vmatprep.subr.mxu0 0.0
    %779 = vmatpush1.msra.mxu0 0.0
    %780 = vmatprep.subr.mxu0 0.0
    %781 = vmatpush1.msra.mxu0 0.0
    %782 = vmatprep.subr.mxu0 0.0
    %783 = vmatpush1.msra.mxu0 0.0
    %784 = vmatprep.subr.mxu0 0.0
    %785 = vmatpush1.msra.mxu0 0.0
    %786 = vmatprep.subr.mxu0 0.0
    %787 = vmatpush1.msra.mxu0 0.0
    %788 = vmatprep.subr.mxu0 0.0
    %789 = vmatpush1.msra.mxu0 0.0
    %790 = vmatprep.subr.mxu0 0.0
    %791 = vmatpush1.msra.mxu0 0.0
    %792 = vmatprep.subr.mxu0 0.0
    %793 = vmatpush1.msra.mxu0 0.0
    %794 = vmatprep.subr.mxu0 0.0
    %795 = vmatpush1.msra.mxu0 0.0
    %796 = vmatprep.subr.mxu0 0.0
    %797 = vmatpush1.msra.mxu0 0.0
    %798 = vmatprep.subr.mxu0 0.0
    %799 = vmatpush1.msra.mxu0 0.0
    %800 = vmatprep.subr.mxu0 0.0
    %801 = vmatpush1.msra.mxu0 0.0
    %802 = vmatprep.subr.mxu0 0.0
    %803 = vmatpush1.msra.mxu0 0.0
    %804 = vmatprep.subr.mxu0 0.0
    %805 = vmatpush1.msra.mxu0 0.0
    %806 = vmatprep.subr.mxu0 0.0
    %807 = vmatpush1.msra.mxu0 0.0
    %808 = vmatprep.subr.mxu0 0.0
    %809 = vmatpush1.msra.mxu0 0.0
    %810 = vmatprep.subr.mxu0 0.0
    %811 = vmatpush1.msra.mxu0 0.0
    %812 = vmatprep.subr.mxu0 0.0
    %813 = vmatpush1.msra.mxu0 0.0
    %814 = vmatprep.subr.mxu0 0.0
    %815 = vmatpush1.msra.mxu0 0.0
    %816 = vmatprep.subr.mxu0 0.0
    %817 = vmatpush1.msra.mxu0 0.0
    %818 = vmatprep.subr.mxu0 0.0
    %819 = vmatpush1.msra.mxu0 0.0
    %820 = vmatprep.subr.mxu0 0.0
    %821 = vmatpush1.msra.mxu0 0.0
    %822 = vmatprep.subr.mxu0 0.0
    %823 = vmatpush1.msra.mxu0 0.0
    %824 = vmatprep.subr.mxu0 0.0
    %825 = vmatpush1.msra.mxu0 0.0
    %826 = vmatprep.subr.mxu0 0.0
    %827 = vmatpush1.msra.mxu0 0.0
    %828 = vmatprep.subr.mxu0 0.0
    %829 = vmatpush1.msra.mxu0 0.0
    %830 = vmatprep.subr.mxu0 0.0
    %831 = vmatpush1.msra.mxu0 0.0
    %832 = vmatprep.subr.mxu0 0.0
    %833 = vmatpush1.msra.mxu0 0.0
    %834 = vmatprep.subr.mxu0 0.0
    %835 = vmatpush1.msra.mxu0 0.0
    %836 = vmatprep.subr.mxu0 0.0
    %837 = vmatpush1.msra.mxu0 0.0
    %838 = vmatprep.subr.mxu0 0.0
    %839 = vmatpush1.msra.mxu0 0.0
    %840 = vmatprep.mubr.f32.mxu0 0.0
    %841 = vmatmul.mubr.f32.gmra.mrb[0].mxu0 %v774
    %v842 = vpop.f32.mrb[0].mxu0
    %v843 = vadd.f32 0.0, %v842
    %v844 = vpop.f32.mrb[0].mxu0
    %845 = vdwg.mxu0
    %v847 = vsel %vm334, %v147, 0
    %849 = vmatprep.subr.mxu0 0.0
    %850 = vmatpush1.msra.mxu0 %v333
    %851 = vmatprep.subr.mxu0 0.0
    %852 = vmatpush1.msra.mxu0 0.0
    %853 = vmatprep.subr.mxu0 0.0
    %854 = vmatpush1.msra.mxu0 0.0
    %855 = vmatprep.subr.mxu0 0.0
    %856 = vmatpush1.msra.mxu0 0.0
    %857 = vmatprep.subr.mxu0 0.0
    %858 = vmatpush1.msra.mxu0 0.0
    %859 = vmatprep.subr.mxu0 0.0
    %860 = vmatpush1.msra.mxu0 0.0
    %861 = vmatprep.subr.mxu0 0.0
    %862 = vmatpush1.msra.mxu0 0.0
    %863 = vmatprep.subr.mxu0 0.0
    %864 = vmatpush1.msra.mxu0 0.0
    %865 = vmatprep.subr.mxu0 0.0
    %866 = vmatpush1.msra.mxu0 0.0
    %867 = vmatprep.subr.mxu0 0.0
    %868 = vmatpush1.msra.mxu0 0.0
    %869 = vmatprep.subr.mxu0 0.0
    %870 = vmatpush1.msra.mxu0 0.0
    %871 = vmatprep.subr.mxu0 0.0
    %872 = vmatpush1.msra.mxu0 0.0
    %873 = vmatprep.subr.mxu0 0.0
    %874 = vmatpush1.msra.mxu0 0.0
    %875 = vmatprep.subr.mxu0 0.0
    %876 = vmatpush1.msra.mxu0 0.0
    %877 = vmatprep.subr.mxu0 0.0
    %878 = vmatpush1.msra.mxu0 0.0
    %879 = vmatprep.subr.mxu0 0.0
    %880 = vmatpush1.msra.mxu0 0.0
    %881 = vmatprep.subr.mxu0 0.0
    %882 = vmatpush1.msra.mxu0 0.0
    %883 = vmatprep.subr.mxu0 0.0
    %884 = vmatpush1.msra.mxu0 0.0
    %885 = vmatprep.subr.mxu0 0.0
    %886 = vmatpush1.msra.mxu0 0.0
    %887 = vmatprep.subr.mxu0 0.0
    %888 = vmatpush1.msra.mxu0 0.0
    %889 = vmatprep.subr.mxu0 0.0
    %890 = vmatpush1.msra.mxu0 0.0
    %891 = vmatprep.subr.mxu0 0.0
    %892 = vmatpush1.msra.mxu0 0.0
    %893 = vmatprep.subr.mxu0 0.0
    %894 = vmatpush1.msra.mxu0 0.0
    %895 = vmatprep.subr.mxu0 0.0
    %896 = vmatpush1.msra.mxu0 0.0
    %897 = vmatprep.subr.mxu0 0.0
    %898 = vmatpush1.msra.mxu0 0.0
    %899 = vmatprep.subr.mxu0 0.0
    %900 = vmatpush1.msra.mxu0 0.0
    %901 = vmatprep.subr.mxu0 0.0
    %902 = vmatpush1.msra.mxu0 0.0
    %903 = vmatprep.subr.mxu0 0.0
    %904 = vmatpush1.msra.mxu0 0.0
    %905 = vmatprep.subr.mxu0 0.0
    %906 = vmatpush1.msra.mxu0 0.0
    %907 = vmatprep.subr.mxu0 0.0
    %908 = vmatpush1.msra.mxu0 0.0
    %909 = vmatprep.subr.mxu0 0.0
    %910 = vmatpush1.msra.mxu0 0.0
    %911 = vmatprep.subr.mxu0 0.0
    %912 = vmatpush1.msra.mxu0 0.0
    %913 = vmatprep.mubr.f32.mxu0 0.0
    %914 = vmatmul.mubr.f32.gmra.mrb[0].mxu0 %v847
    %v915 = vpop.f32.mrb[0].mxu0
    %v916 = vadd.f32 0.0, %v915
    %v917 = vpop.f32.mrb[0].mxu0
    %918 = vdwg.mxu0
    %s919 = scalar_lea.vmem %s6, 4
    %v920 = vld [vmem:[%s919] sm:$0xf]
    %v921 = vlaneseq
    %v922 = vshrl.u32 %v921, 7
    %v923 = vsub.s32 0, %v922
    %v924 = vrot.slane %v136, %v923
    %926 = vbcast.lane.b32.xlu0 %v924, 256
    %v927 = vpop.permute.xlu0 %926
    %v928 = vlaneseq
    %v929 = vshrl.u32 %v928, 7
    %v930 = vsub.s32 1, %v929
    %v931 = vrot.slane %v136, %v930
    %933 = vbcast.lane.b32.xlu0 %v931, 256
    %v934 = vpop.permute.xlu0 %933
    %v935 = vlaneseq
    %v936 = vshrl.u32 %v935, 7
    %v937 = vsub.s32 2, %v936
    %v938 = vrot.slane %v136, %v937
    %940 = vbcast.lane.b32.xlu0 %v938, 256
    %v941 = vpop.permute.xlu0 %940
    %v942 = vlaneseq
    %v943 = vshrl.u32 %v942, 7
    %v944 = vsub.s32 3, %v943
    %v945 = vrot.slane %v136, %v944
    %947 = vbcast.lane.b32.xlu0 %v945, 256
    %v948 = vpop.permute.xlu0 %947
    %v949 = vlaneseq
    %v950 = vshrl.u32 %v949, 7
    %v951 = vsub.s32 0, %v950
    %v952 = vrot.slane %v137, %v951
    %954 = vbcast.lane.b32.xlu0 %v952, 256
    %v955 = vpop.permute.xlu0 %954
    %v956 = vlaneseq
    %v957 = vshrl.u32 %v956, 7
    %v958 = vsub.s32 1, %v957
    %v959 = vrot.slane %v137, %v958
    %961 = vbcast.lane.b32.xlu0 %v959, 256
    %v962 = vpop.permute.xlu0 %961
    %v963 = vlaneseq
    %v964 = vshrl.u32 %v963, 7
    %v965 = vsub.s32 2, %v964
    %v966 = vrot.slane %v137, %v965
    %968 = vbcast.lane.b32.xlu0 %v966, 256
    %v969 = vpop.permute.xlu0 %968
    %v970 = vlaneseq
    %v971 = vshrl.u32 %v970, 7
    %v972 = vsub.s32 3, %v971
    %v973 = vrot.slane %v137, %v972
    %975 = vbcast.lane.b32.xlu0 %v973, 256
    %v976 = vpop.permute.xlu0 %975
    %v977 = vlaneseq
    %v978 = vshrl.u32 %v977, 7
    %v979 = vsub.s32 4, %v978
    %v980 = vrot.slane %v927, %v979
    %v981 = vlaneseq
    %v982 = vshrl.u32 %v981, 7
    %v983 = vsub.s32 5, %v982
    %v984 = vrot.slane %v927, %v983
    %v985 = vlaneseq
    %v986 = vshrl.u32 %v985, 7
    %v987 = vsub.s32 6, %v986
    %v988 = vrot.slane %v927, %v987
    %v989 = vlaneseq
    %v990 = vshrl.u32 %v989, 7
    %v991 = vsub.s32 7, %v990
    %v992 = vrot.slane %v927, %v991
    %v993 = vlaneseq
    %v994 = vshrl.u32 %v993, 7
    %v995 = vsub.s32 4, %v994
    %v996 = vrot.slane %v934, %v995
    %v997 = vlaneseq
    %v998 = vshrl.u32 %v997, 7
    %v999 = vsub.s32 5, %v998
    %v1000 = vrot.slane %v934, %v999
    %v1001 = vlaneseq
    %v1002 = vshrl.u32 %v1001, 7
    %v1003 = vsub.s32 6, %v1002
    %v1004 = vrot.slane %v934, %v1003
    %v1005 = vlaneseq
    %v1006 = vshrl.u32 %v1005, 7
    %v1007 = vsub.s32 7, %v1006
    %v1008 = vrot.slane %v934, %v1007
    %v1009 = vlaneseq
    %v1010 = vshrl.u32 %v1009, 7
    %v1011 = vsub.s32 4, %v1010
    %v1012 = vrot.slane %v941, %v1011
    %v1013 = vlaneseq
    %v1014 = vshrl.u32 %v1013, 7
    %v1015 = vsub.s32 5, %v1014
    %v1016 = vrot.slane %v941, %v1015
    %v1017 = vlaneseq
    %v1018 = vshrl.u32 %v1017, 7
    %v1019 = vsub.s32 6, %v1018
    %v1020 = vrot.slane %v941, %v1019
    %v1021 = vlaneseq
    %v1022 = vshrl.u32 %v1021, 7
    %v1023 = vsub.s32 7, %v1022
    %v1024 = vrot.slane %v941, %v1023
    %v1025 = vlaneseq
    %v1026 = vshrl.u32 %v1025, 7
    %v1027 = vsub.s32 4, %v1026
    %v1028 = vrot.slane %v948, %v1027
    %v1029 = vlaneseq
    %v1030 = vshrl.u32 %v1029, 7
    %v1031 = vsub.s32 5, %v1030
    %v1032 = vrot.slane %v948, %v1031
    %v1033 = vlaneseq
    %v1034 = vshrl.u32 %v1033, 7
    %v1035 = vsub.s32 6, %v1034
    %v1036 = vrot.slane %v948, %v1035
    %v1037 = vlaneseq
    %v1038 = vshrl.u32 %v1037, 7
    %v1039 = vsub.s32 7, %v1038
    %v1040 = vrot.slane %v948, %v1039
    %v1041 = vlaneseq
    %v1042 = vshrl.u32 %v1041, 7
    %v1043 = vsub.s32 4, %v1042
    %v1044 = vrot.slane %v955, %v1043
    %v1045 = vlaneseq
    %v1046 = vshrl.u32 %v1045, 7
    %v1047 = vsub.s32 5, %v1046
    %v1048 = vrot.slane %v955, %v1047
    %v1049 = vlaneseq
    %v1050 = vshrl.u32 %v1049, 7
    %v1051 = vsub.s32 6, %v1050
    %v1052 = vrot.slane %v955, %v1051
    %v1053 = vlaneseq
    %v1054 = vshrl.u32 %v1053, 7
    %v1055 = vsub.s32 7, %v1054
    %v1056 = vrot.slane %v955, %v1055
    %v1057 = vlaneseq
    %v1058 = vshrl.u32 %v1057, 7
    %v1059 = vsub.s32 4, %v1058
    %v1060 = vrot.slane %v962, %v1059
    %v1061 = vlaneseq
    %v1062 = vshrl.u32 %v1061, 7
    %v1063 = vsub.s32 5, %v1062
    %v1064 = vrot.slane %v962, %v1063
    %v1065 = vlaneseq
    %v1066 = vshrl.u32 %v1065, 7
    %v1067 = vsub.s32 6, %v1066
    %v1068 = vrot.slane %v962, %v1067
    %v1069 = vlaneseq
    %v1070 = vshrl.u32 %v1069, 7
    %v1071 = vsub.s32 7, %v1070
    %v1072 = vrot.slane %v962, %v1071
    %v1073 = vlaneseq
    %v1074 = vshrl.u32 %v1073, 7
    %v1075 = vsub.s32 4, %v1074
    %v1076 = vrot.slane %v969, %v1075
    %v1077 = vlaneseq
    %v1078 = vshrl.u32 %v1077, 7
    %v1079 = vsub.s32 5, %v1078
    %v1080 = vrot.slane %v969, %v1079
    %v1081 = vlaneseq
    %v1082 = vshrl.u32 %v1081, 7
    %v1083 = vsub.s32 6, %v1082
    %v1084 = vrot.slane %v969, %v1083
    %v1085 = vlaneseq
    %v1086 = vshrl.u32 %v1085, 7
    %v1087 = vsub.s32 7, %v1086
    %v1088 = vrot.slane %v969, %v1087
    %v1089 = vlaneseq
    %v1090 = vshrl.u32 %v1089, 7
    %v1091 = vsub.s32 4, %v1090
    %v1092 = vrot.slane %v976, %v1091
    %v1093 = vlaneseq
    %v1094 = vshrl.u32 %v1093, 7
    %v1095 = vsub.s32 5, %v1094
    %v1096 = vrot.slane %v976, %v1095
    %v1097 = vlaneseq
    %v1098 = vshrl.u32 %v1097, 7
    %v1099 = vsub.s32 6, %v1098
    %v1100 = vrot.slane %v976, %v1099
    %v1101 = vlaneseq
    %v1102 = vshrl.u32 %v1101, 7
    %v1103 = vsub.s32 7, %v1102
    %v1104 = vrot.slane %v976, %v1103
    %v1105 = vmul.f32 %v405, %v980
    %v1106 = vmul.f32 %v478, %v984
    %v1107 = vmul.f32 %v551, %v988
    %v1108 = vmul.f32 %v624, %v992
    %v1109 = vmul.f32 %v405, %v996
    %v1110 = vmul.f32 %v478, %v1000
    %v1111 = vmul.f32 %v551, %v1004
    %v1112 = vmul.f32 %v624, %v1008
    %v1113 = vmul.f32 %v405, %v1012
    %v1114 = vmul.f32 %v478, %v1016
    %v1115 = vmul.f32 %v551, %v1020
    %v1116 = vmul.f32 %v624, %v1024
    %v1117 = vmul.f32 %v405, %v1028
    %v1118 = vmul.f32 %v478, %v1032
    %v1119 = vmul.f32 %v551, %v1036
    %v1120 = vmul.f32 %v624, %v1040
    %v1121 = vmul.f32 %v697, %v1044
    %v1122 = vmul.f32 %v770, %v1048
    %v1123 = vmul.f32 %v843, %v1052
    %v1124 = vmul.f32 %v916, %v1056
    %v1125 = vmul.f32 %v697, %v1060
    %v1126 = vmul.f32 %v770, %v1064
    %v1127 = vmul.f32 %v843, %v1068
    %v1128 = vmul.f32 %v916, %v1072
    %v1129 = vmul.f32 %v697, %v1076
    %v1130 = vmul.f32 %v770, %v1080
    %v1131 = vmul.f32 %v843, %v1084
    %v1132 = vmul.f32 %v916, %v1088
    %v1133 = vmul.f32 %v697, %v1092
    %v1134 = vmul.f32 %v770, %v1096
    %v1135 = vmul.f32 %v843, %v1100
    %v1136 = vmul.f32 %v916, %v1104
    %vm1137 = vcmask 269312
    %v1138 = vsel %vm1137, %v1105, 0.0
    %v1139 = vsel %vm1137, %v1106, 0.0
    %v1140 = vadd.f32 %v1138, %v1139
    %v1141 = vsel %vm1137, %v1107, 0.0
    %v1142 = vadd.f32 %v1140, %v1141
    %v1143 = vsel %vm1137, %v1108, 0.0
    %v1144 = vadd.f32 %v1142, %v1143
    %v1145 = vsel %vm1137, %v1109, 0.0
    %v1146 = vsel %vm1137, %v1110, 0.0
    %v1147 = vadd.f32 %v1145, %v1146
    %v1148 = vsel %vm1137, %v1111, 0.0
    %v1149 = vadd.f32 %v1147, %v1148
    %v1150 = vsel %vm1137, %v1112, 0.0
    %v1151 = vadd.f32 %v1149, %v1150
    %v1152 = vsel %vm1137, %v1113, 0.0
    %v1153 = vsel %vm1137, %v1114, 0.0
    %v1154 = vadd.f32 %v1152, %v1153
    %v1155 = vsel %vm1137, %v1115, 0.0
    %v1156 = vadd.f32 %v1154, %v1155
    %v1157 = vsel %vm1137, %v1116, 0.0
    %v1158 = vadd.f32 %v1156, %v1157
    %v1159 = vsel %vm1137, %v1117, 0.0
    %v1160 = vsel %vm1137, %v1118, 0.0
    %v1161 = vadd.f32 %v1159, %v1160
    %v1162 = vsel %vm1137, %v1119, 0.0
    %v1163 = vadd.f32 %v1161, %v1162
    %v1164 = vsel %vm1137, %v1120, 0.0
    %v1165 = vadd.f32 %v1163, %v1164
    %v1166 = vsel %vm1137, %v1121, 0.0
    %v1167 = vsel %vm1137, %v1122, 0.0
    %v1168 = vadd.f32 %v1166, %v1167
    %v1169 = vsel %vm1137, %v1123, 0.0
    %v1170 = vadd.f32 %v1168, %v1169
    %v1171 = vsel %vm1137, %v1124, 0.0
    %v1172 = vadd.f32 %v1170, %v1171
    %v1173 = vsel %vm1137, %v1125, 0.0
    %v1174 = vsel %vm1137, %v1126, 0.0
    %v1175 = vadd.f32 %v1173, %v1174
    %v1176 = vsel %vm1137, %v1127, 0.0
    %v1177 = vadd.f32 %v1175, %v1176
    %v1178 = vsel %vm1137, %v1128, 0.0
    %v1179 = vadd.f32 %v1177, %v1178
    %v1180 = vsel %vm1137, %v1129, 0.0
    %v1181 = vsel %vm1137, %v1130, 0.0
    %v1182 = vadd.f32 %v1180, %v1181
    %v1183 = vsel %vm1137, %v1131, 0.0
    %v1184 = vadd.f32 %v1182, %v1183
    %v1185 = vsel %vm1137, %v1132, 0.0
    %v1186 = vadd.f32 %v1184, %v1185
    %v1187 = vsel %vm1137, %v1133, 0.0
    %v1188 = vsel %vm1137, %v1134, 0.0
    %v1189 = vadd.f32 %v1187, %v1188
    %v1190 = vsel %vm1137, %v1135, 0.0
    %v1191 = vadd.f32 %v1189, %v1190
    %v1192 = vsel %vm1137, %v1136, 0.0
    %v1193 = vadd.f32 %v1191, %v1192
    %v1196 = vunpack.c.l.s4 1966171168
    %v1197 = vunpack.c.0.s8 %v1196
    %v1198 = vlaneseq
    %v1199 = vshrl.u32 %v1198, 7
    %v1200 = vsub.s32 %v1197, %v1199
    %v1201 = vrot.slane %v920, %v1200
    %v1202 = vcombine.high %v1201, %v1201
    %v1204 = vunpack.c.l.s4 1966171168
    %v1205 = vunpack.c.0.s8 %v1204
    %v1206 = vlaneseq
    %v1207 = vshrl.u32 %v1206, 7
    %v1208 = vsub.s32 %v1205, %v1207
    %v1209 = vrot.slane %v1201, %v1208
    %v1211 = vunpack.c.l.s4 1966171168
    %v1212 = vunpack.c.0.s8 %v1211
    %v1213 = vlaneseq
    %v1214 = vshrl.u32 %v1213, 7
    %v1215 = vsub.s32 %v1212, %v1214
    %v1216 = vrot.slane %v1202, %v1215
    %v1217 = vcombine.high %v1209, %v1209
    %v1218 = vcombine.high %v1216, %v1216
    %v1219 = vlaneseq
    %v1220 = vshrl.u32 %v1219, 7
    %v1221 = vsub.s32 0, %v1220
    %v1222 = vrot.slane %v1209, %v1221
    %v1223 = vlaneseq
    %v1224 = vshrl.u32 %v1223, 7
    %v1225 = vsub.s32 0, %v1224
    %v1226 = vrot.slane %v1216, %v1225
    %v1227 = vlaneseq
    %v1228 = vshrl.u32 %v1227, 7
    %v1229 = vsub.s32 0, %v1228
    %v1230 = vrot.slane %v1217, %v1229
    %v1231 = vlaneseq
    %v1232 = vshrl.u32 %v1231, 7
    %v1233 = vsub.s32 0, %v1232
    %v1234 = vrot.slane %v1218, %v1233
    %v1239 = vmul.f32 %v1144, %v1222
    %v1240 = vmul.f32 %v1151, %v1226
    %v1241 = vmul.f32 %v1158, %v1230
    %v1242 = vmul.f32 %v1165, %v1234
    %v1243 = vmul.f32 %v1172, %v1222
    %v1244 = vmul.f32 %v1179, %v1226
    %v1245 = vmul.f32 %v1186, %v1230
    %v1246 = vmul.f32 %v1193, %v1234
    %v1247 = vmul.f32 %v1239, %v296
    %v1248 = vmul.f32 %v1240, %v300
    %v1249 = vmul.f32 %v1241, %v304
    %v1250 = vmul.f32 %v1242, %v308
    %v1251 = vmul.f32 %v1243, %v312
    %v1252 = vmul.f32 %v1244, %v316
    %v1253 = vmul.f32 %v1245, %v320
    %v1254 = vmul.f32 %v1246, %v324
    %1255 = vmatprep.subr.mxu0 0.0
    %1256 = vmatpush1.msra.mxu0 %v1247
    %1257 = vmatprep.subr.mxu0 0.0
    %1258 = vmatpush1.msra.mxu0 0.0
    %1259 = vmatprep.subr.mxu0 0.0
    %1260 = vmatpush1.msra.mxu0 0.0
    %1261 = vmatprep.subr.mxu0 0.0
    %1262 = vmatpush1.msra.mxu0 0.0
    %1263 = vmatprep.subr.mxu0 0.0
    %1264 = vmatpush1.msra.mxu0 0.0
    %1265 = vmatprep.subr.mxu0 0.0
    %1266 = vmatpush1.msra.mxu0 0.0
    %1267 = vmatprep.subr.mxu0 0.0
    %1268 = vmatpush1.msra.mxu0 0.0
    %1269 = vmatprep.subr.mxu0 0.0
    %1270 = vmatpush1.msra.mxu0 0.0
    %1271 = vmatprep.subr.mxu0 0.0
    %1272 = vmatpush1.msra.mxu0 0.0
    %1273 = vmatprep.subr.mxu0 0.0
    %1274 = vmatpush1.msra.mxu0 0.0
    %1275 = vmatprep.subr.mxu0 0.0
    %1276 = vmatpush1.msra.mxu0 0.0
    %1277 = vmatprep.subr.mxu0 0.0
    %1278 = vmatpush1.msra.mxu0 0.0
    %1279 = vmatprep.subr.mxu0 0.0
    %1280 = vmatpush1.msra.mxu0 0.0
    %1281 = vmatprep.subr.mxu0 0.0
    %1282 = vmatpush1.msra.mxu0 0.0
    %1283 = vmatprep.subr.mxu0 0.0
    %1284 = vmatpush1.msra.mxu0 0.0
    %1285 = vmatprep.subr.mxu0 0.0
    %1286 = vmatpush1.msra.mxu0 0.0
    %1287 = vmatprep.subr.mxu0 0.0
    %1288 = vmatpush1.msra.mxu0 0.0
    %1289 = vmatprep.subr.mxu0 0.0
    %1290 = vmatpush1.msra.mxu0 0.0
    %1291 = vmatprep.subr.mxu0 0.0
    %1292 = vmatpush1.msra.mxu0 0.0
    %1293 = vmatprep.subr.mxu0 0.0
    %1294 = vmatpush1.msra.mxu0 0.0
    %1295 = vmatprep.subr.mxu0 0.0
    %1296 = vmatpush1.msra.mxu0 0.0
    %1297 = vmatprep.subr.mxu0 0.0
    %1298 = vmatpush1.msra.mxu0 0.0
    %1299 = vmatprep.subr.mxu0 0.0
    %1300 = vmatpush1.msra.mxu0 0.0
    %1301 = vmatprep.subr.mxu0 0.0
    %1302 = vmatpush1.msra.mxu0 0.0
    %1303 = vmatprep.subr.mxu0 0.0
    %1304 = vmatpush1.msra.mxu0 0.0
    %1305 = vmatprep.subr.mxu0 0.0
    %1306 = vmatpush1.msra.mxu0 0.0
    %1307 = vmatprep.subr.mxu0 0.0
    %1308 = vmatpush1.msra.mxu0 0.0
    %1309 = vmatprep.subr.mxu0 0.0
    %1310 = vmatpush1.msra.mxu0 0.0
    %1311 = vmatprep.subr.mxu0 0.0
    %1312 = vmatpush1.msra.mxu0 0.0
    %1313 = vmatprep.subr.mxu0 0.0
    %1314 = vmatpush1.msra.mxu0 0.0
    %1315 = vmatprep.subr.mxu0 0.0
    %1316 = vmatpush1.msra.mxu0 0.0
    %1317 = vmatprep.subr.mxu0 0.0
    %1318 = vmatpush1.msra.mxu0 0.0
    %1319 = vmatprep.mubr.f32.mxu0 0.0
    %1320 = vmatmul.mubr.f32.gmra.mrb[0].mxu0 %v336
    %v1321 = vpop.f32.mrb[0].mxu0
    %v1322 = vadd.f32 0.0, %v1321
    %v1323 = vpop.f32.mrb[0].mxu0
    %1324 = vdwg.mxu0
    %1325 = vmatprep.subr.mxu0 0.0
    %1326 = vmatpush1.msra.mxu0 %v1248
    %1327 = vmatprep.subr.mxu0 0.0
    %1328 = vmatpush1.msra.mxu0 0.0
    %1329 = vmatprep.subr.mxu0 0.0
    %1330 = vmatpush1.msra.mxu0 0.0
    %1331 = vmatprep.subr.mxu0 0.0
    %1332 = vmatpush1.msra.mxu0 0.0
    %1333 = vmatprep.subr.mxu0 0.0
    %1334 = vmatpush1.msra.mxu0 0.0
    %1335 = vmatprep.subr.mxu0 0.0
    %1336 = vmatpush1.msra.mxu0 0.0
    %1337 = vmatprep.subr.mxu0 0.0
    %1338 = vmatpush1.msra.mxu0 0.0
    %1339 = vmatprep.subr.mxu0 0.0
    %1340 = vmatpush1.msra.mxu0 0.0
    %1341 = vmatprep.subr.mxu0 0.0
    %1342 = vmatpush1.msra.mxu0 0.0
    %1343 = vmatprep.subr.mxu0 0.0
    %1344 = vmatpush1.msra.mxu0 0.0
    %1345 = vmatprep.subr.mxu0 0.0
    %1346 = vmatpush1.msra.mxu0 0.0
    %1347 = vmatprep.subr.mxu0 0.0
    %1348 = vmatpush1.msra.mxu0 0.0
    %1349 = vmatprep.subr.mxu0 0.0
    %1350 = vmatpush1.msra.mxu0 0.0
    %1351 = vmatprep.subr.mxu0 0.0
    %1352 = vmatpush1.msra.mxu0 0.0
    %1353 = vmatprep.subr.mxu0 0.0
    %1354 = vmatpush1.msra.mxu0 0.0
    %1355 = vmatprep.subr.mxu0 0.0
    %1356 = vmatpush1.msra.mxu0 0.0
    %1357 = vmatprep.subr.mxu0 0.0
    %1358 = vmatpush1.msra.mxu0 0.0
    %1359 = vmatprep.subr.mxu0 0.0
    %1360 = vmatpush1.msra.mxu0 0.0
    %1361 = vmatprep.subr.mxu0 0.0
    %1362 = vmatpush1.msra.mxu0 0.0
    %1363 = vmatprep.subr.mxu0 0.0
    %1364 = vmatpush1.msra.mxu0 0.0
    %1365 = vmatprep.subr.mxu0 0.0
    %1366 = vmatpush1.msra.mxu0 0.0
    %1367 = vmatprep.subr.mxu0 0.0
    %1368 = vmatpush1.msra.mxu0 0.0
    %1369 = vmatprep.subr.mxu0 0.0
    %1370 = vmatpush1.msra.mxu0 0.0
    %1371 = vmatprep.subr.mxu0 0.0
    %1372 = vmatpush1.msra.mxu0 0.0
    %1373 = vmatprep.subr.mxu0 0.0
    %1374 = vmatpush1.msra.mxu0 0.0
    %1375 = vmatprep.subr.mxu0 0.0
    %1376 = vmatpush1.msra.mxu0 0.0
    %1377 = vmatprep.subr.mxu0 0.0
    %1378 = vmatpush1.msra.mxu0 0.0
    %1379 = vmatprep.subr.mxu0 0.0
    %1380 = vmatpush1.msra.mxu0 0.0
    %1381 = vmatprep.subr.mxu0 0.0
    %1382 = vmatpush1.msra.mxu0 0.0
    %1383 = vmatprep.subr.mxu0 0.0
    %1384 = vmatpush1.msra.mxu0 0.0
    %1385 = vmatprep.subr.mxu0 0.0
    %1386 = vmatpush1.msra.mxu0 0.0
    %1387 = vmatprep.subr.mxu0 0.0
    %1388 = vmatpush1.msra.mxu0 0.0
    %1389 = vmatprep.mubr.f32.mxu0 0.0
    %1390 = vmatmul.mubr.f32.gmra.mrb[0].mxu0 %v409
    %v1391 = vpop.f32.mrb[0].mxu0
    %v1392 = vadd.f32 0.0, %v1391
    %v1393 = vpop.f32.mrb[0].mxu0
    %1394 = vdwg.mxu0
    %1395 = vmatprep.subr.mxu0 0.0
    %1396 = vmatpush1.msra.mxu0 %v1249
    %1397 = vmatprep.subr.mxu0 0.0
    %1398 = vmatpush1.msra.mxu0 0.0
    %1399 = vmatprep.subr.mxu0 0.0
    %1400 = vmatpush1.msra.mxu0 0.0
    %1401 = vmatprep.subr.mxu0 0.0
    %1402 = vmatpush1.msra.mxu0 0.0
    %1403 = vmatprep.subr.mxu0 0.0
    %1404 = vmatpush1.msra.mxu0 0.0
    %1405 = vmatprep.subr.mxu0 0.0
    %1406 = vmatpush1.msra.mxu0 0.0
    %1407 = vmatprep.subr.mxu0 0.0
    %1408 = vmatpush1.msra.mxu0 0.0
    %1409 = vmatprep.subr.mxu0 0.0
    %1410 = vmatpush1.msra.mxu0 0.0
    %1411 = vmatprep.subr.mxu0 0.0
    %1412 = vmatpush1.msra.mxu0 0.0
    %1413 = vmatprep.subr.mxu0 0.0
    %1414 = vmatpush1.msra.mxu0 0.0
    %1415 = vmatprep.subr.mxu0 0.0
    %1416 = vmatpush1.msra.mxu0 0.0
    %1417 = vmatprep.subr.mxu0 0.0
    %1418 = vmatpush1.msra.mxu0 0.0
    %1419 = vmatprep.subr.mxu0 0.0
    %1420 = vmatpush1.msra.mxu0 0.0
    %1421 = vmatprep.subr.mxu0 0.0
    %1422 = vmatpush1.msra.mxu0 0.0
    %1423 = vmatprep.subr.mxu0 0.0
    %1424 = vmatpush1.msra.mxu0 0.0
    %1425 = vmatprep.subr.mxu0 0.0
    %1426 = vmatpush1.msra.mxu0 0.0
    %1427 = vmatprep.subr.mxu0 0.0
    %1428 = vmatpush1.msra.mxu0 0.0
    %1429 = vmatprep.subr.mxu0 0.0
    %1430 = vmatpush1.msra.mxu0 0.0
    %1431 = vmatprep.subr.mxu0 0.0
    %1432 = vmatpush1.msra.mxu0 0.0
    %1433 = vmatprep.subr.mxu0 0.0
    %1434 = vmatpush1.msra.mxu0 0.0
    %1435 = vmatprep.subr.mxu0 0.0
    %1436 = vmatpush1.msra.mxu0 0.0
    %1437 = vmatprep.subr.mxu0 0.0
    %1438 = vmatpush1.msra.mxu0 0.0
    %1439 = vmatprep.subr.mxu0 0.0
    %1440 = vmatpush1.msra.mxu0 0.0
    %1441 = vmatprep.subr.mxu0 0.0
    %1442 = vmatpush1.msra.mxu0 0.0
    %1443 = vmatprep.subr.mxu0 0.0
    %1444 = vmatpush1.msra.mxu0 0.0
    %1445 = vmatprep.subr.mxu0 0.0
    %1446 = vmatpush1.msra.mxu0 0.0
    %1447 = vmatprep.subr.mxu0 0.0
    %1448 = vmatpush1.msra.mxu0 0.0
    %1449 = vmatprep.subr.mxu0 0.0
    %1450 = vmatpush1.msra.mxu0 0.0
    %1451 = vmatprep.subr.mxu0 0.0
    %1452 = vmatpush1.msra.mxu0 0.0
    %1453 = vmatprep.subr.mxu0 0.0
    %1454 = vmatpush1.msra.mxu0 0.0
    %1455 = vmatprep.subr.mxu0 0.0
    %1456 = vmatpush1.msra.mxu0 0.0
    %1457 = vmatprep.subr.mxu0 0.0
    %1458 = vmatpush1.msra.mxu0 0.0
    %1459 = vmatprep.mubr.f32.mxu0 0.0
    %1460 = vmatmul.mubr.f32.gmra.mrb[0].mxu0 %v482
    %v1461 = vpop.f32.mrb[0].mxu0
    %v1462 = vadd.f32 0.0, %v1461
    %v1463 = vpop.f32.mrb[0].mxu0
    %1464 = vdwg.mxu0
    %1465 = vmatprep.subr.mxu0 0.0
    %1466 = vmatpush1.msra.mxu0 %v1250
    %1467 = vmatprep.subr.mxu0 0.0
    %1468 = vmatpush1.msra.mxu0 0.0
    %1469 = vmatprep.subr.mxu0 0.0
    %1470 = vmatpush1.msra.mxu0 0.0
    %1471 = vmatprep.subr.mxu0 0.0
    %1472 = vmatpush1.msra.mxu0 0.0
    %1473 = vmatprep.subr.mxu0 0.0
    %1474 = vmatpush1.msra.mxu0 0.0
    %1475 = vmatprep.subr.mxu0 0.0
    %1476 = vmatpush1.msra.mxu0 0.0
    %1477 = vmatprep.subr.mxu0 0.0
    %1478 = vmatpush1.msra.mxu0 0.0
    %1479 = vmatprep.subr.mxu0 0.0
    %1480 = vmatpush1.msra.mxu0 0.0
    %1481 = vmatprep.subr.mxu0 0.0
    %1482 = vmatpush1.msra.mxu0 0.0
    %1483 = vmatprep.subr.mxu0 0.0
    %1484 = vmatpush1.msra.mxu0 0.0
    %1485 = vmatprep.subr.mxu0 0.0
    %1486 = vmatpush1.msra.mxu0 0.0
    %1487 = vmatprep.subr.mxu0 0.0
    %1488 = vmatpush1.msra.mxu0 0.0
    %1489 = vmatprep.subr.mxu0 0.0
    %1490 = vmatpush1.msra.mxu0 0.0
    %1491 = vmatprep.subr.mxu0 0.0
    %1492 = vmatpush1.msra.mxu0 0.0
    %1493 = vmatprep.subr.mxu0 0.0
    %1494 = vmatpush1.msra.mxu0 0.0
    %1495 = vmatprep.subr.mxu0 0.0
    %1496 = vmatpush1.msra.mxu0 0.0
    %1497 = vmatprep.subr.mxu0 0.0
    %1498 = vmatpush1.msra.mxu0 0.0
    %1499 = vmatprep.subr.mxu0 0.0
    %1500 = vmatpush1.msra.mxu0 0.0
    %1501 = vmatprep.subr.mxu0 0.0
    %1502 = vmatpush1.msra.mxu0 0.0
    %1503 = vmatprep.subr.mxu0 0.0
    %1504 = vmatpush1.msra.mxu0 0.0
    %1505 = vmatprep.subr.mxu0 0.0
    %1506 = vmatpush1.msra.mxu0 0.0
    %1507 = vmatprep.subr.mxu0 0.0
    %1508 = vmatpush1.msra.mxu0 0.0
    %1509 = vmatprep.subr.mxu0 0.0
    %1510 = vmatpush1.msra.mxu0 0.0
    %1511 = vmatprep.subr.mxu0 0.0
    %1512 = vmatpush1.msra.mxu0 0.0
    %1513 = vmatprep.subr.mxu0 0.0
    %1514 = vmatpush1.msra.mxu0 0.0
    %1515 = vmatprep.subr.mxu0 0.0
    %1516 = vmatpush1.msra.mxu0 0.0
    %1517 = vmatprep.subr.mxu0 0.0
    %1518 = vmatpush1.msra.mxu0 0.0
    %1519 = vmatprep.subr.mxu0 0.0
    %1520 = vmatpush1.msra.mxu0 0.0
    %1521 = vmatprep.subr.mxu0 0.0
    %1522 = vmatpush1.msra.mxu0 0.0
    %1523 = vmatprep.subr.mxu0 0.0
    %1524 = vmatpush1.msra.mxu0 0.0
    %1525 = vmatprep.subr.mxu0 0.0
    %1526 = vmatpush1.msra.mxu0 0.0
    %1527 = vmatprep.subr.mxu0 0.0
    %1528 = vmatpush1.msra.mxu0 0.0
    %1529 = vmatprep.mubr.f32.mxu0 0.0
    %1530 = vmatmul.mubr.f32.gmra.mrb[0].mxu0 %v555
    %v1531 = vpop.f32.mrb[0].mxu0
    %v1532 = vadd.f32 0.0, %v1531
    %v1533 = vpop.f32.mrb[0].mxu0
    %1534 = vdwg.mxu0
    %1535 = vmatprep.subr.mxu0 0.0
    %1536 = vmatpush1.msra.mxu0 %v1251
    %1537 = vmatprep.subr.mxu0 0.0
    %1538 = vmatpush1.msra.mxu0 0.0
    %1539 = vmatprep.subr.mxu0 0.0
    %1540 = vmatpush1.msra.mxu0 0.0
    %1541 = vmatprep.subr.mxu0 0.0
    %1542 = vmatpush1.msra.mxu0 0.0
    %1543 = vmatprep.subr.mxu0 0.0
    %1544 = vmatpush1.msra.mxu0 0.0
    %1545 = vmatprep.subr.mxu0 0.0
    %1546 = vmatpush1.msra.mxu0 0.0
    %1547 = vmatprep.subr.mxu0 0.0
    %1548 = vmatpush1.msra.mxu0 0.0
    %1549 = vmatprep.subr.mxu0 0.0
    %1550 = vmatpush1.msra.mxu0 0.0
    %1551 = vmatprep.subr.mxu0 0.0
    %1552 = vmatpush1.msra.mxu0 0.0
    %1553 = vmatprep.subr.mxu0 0.0
    %1554 = vmatpush1.msra.mxu0 0.0
    %1555 = vmatprep.subr.mxu0 0.0
    %1556 = vmatpush1.msra.mxu0 0.0
    %1557 = vmatprep.subr.mxu0 0.0
    %1558 = vmatpush1.msra.mxu0 0.0
    %1559 = vmatprep.subr.mxu0 0.0
    %1560 = vmatpush1.msra.mxu0 0.0
    %1561 = vmatprep.subr.mxu0 0.0
    %1562 = vmatpush1.msra.mxu0 0.0
    %1563 = vmatprep.subr.mxu0 0.0
    %1564 = vmatpush1.msra.mxu0 0.0
    %1565 = vmatprep.subr.mxu0 0.0
    %1566 = vmatpush1.msra.mxu0 0.0
    %1567 = vmatprep.subr.mxu0 0.0
    %1568 = vmatpush1.msra.mxu0 0.0
    %1569 = vmatprep.subr.mxu0 0.0
    %1570 = vmatpush1.msra.mxu0 0.0
    %1571 = vmatprep.subr.mxu0 0.0
    %1572 = vmatpush1.msra.mxu0 0.0
    %1573 = vmatprep.subr.mxu0 0.0
    %1574 = vmatpush1.msra.mxu0 0.0
    %1575 = vmatprep.subr.mxu0 0.0
    %1576 = vmatpush1.msra.mxu0 0.0
    %1577 = vmatprep.subr.mxu0 0.0
    %1578 = vmatpush1.msra.mxu0 0.0
    %1579 = vmatprep.subr.mxu0 0.0
    %1580 = vmatpush1.msra.mxu0 0.0
    %1581 = vmatprep.subr.mxu0 0.0
    %1582 = vmatpush1.msra.mxu0 0.0
    %1583 = vmatprep.subr.mxu0 0.0
    %1584 = vmatpush1.msra.mxu0 0.0
    %1585 = vmatprep.subr.mxu0 0.0
    %1586 = vmatpush1.msra.mxu0 0.0
    %1587 = vmatprep.subr.mxu0 0.0
    %1588 = vmatpush1.msra.mxu0 0.0
    %1589 = vmatprep.subr.mxu0 0.0
    %1590 = vmatpush1.msra.mxu0 0.0
    %1591 = vmatprep.subr.mxu0 0.0
    %1592 = vmatpush1.msra.mxu0 0.0
    %1593 = vmatprep.subr.mxu0 0.0
    %1594 = vmatpush1.msra.mxu0 0.0
    %1595 = vmatprep.subr.mxu0 0.0
    %1596 = vmatpush1.msra.mxu0 0.0
    %1597 = vmatprep.subr.mxu0 0.0
    %1598 = vmatpush1.msra.mxu0 0.0
    %1599 = vmatprep.mubr.f32.mxu0 0.0
    %1600 = vmatmul.mubr.f32.gmra.mrb[0].mxu0 %v628
    %v1601 = vpop.f32.mrb[0].mxu0
    %v1602 = vadd.f32 0.0, %v1601
    %v1603 = vpop.f32.mrb[0].mxu0
    %1604 = vdwg.mxu0
    %1605 = vmatprep.subr.mxu0 0.0
    %1606 = vmatpush1.msra.mxu0 %v1252
    %1607 = vmatprep.subr.mxu0 0.0
    %1608 = vmatpush1.msra.mxu0 0.0
    %1609 = vmatprep.subr.mxu0 0.0
    %1610 = vmatpush1.msra.mxu0 0.0
    %1611 = vmatprep.subr.mxu0 0.0
    %1612 = vmatpush1.msra.mxu0 0.0
    %1613 = vmatprep.subr.mxu0 0.0
    %1614 = vmatpush1.msra.mxu0 0.0
    %1615 = vmatprep.subr.mxu0 0.0
    %1616 = vmatpush1.msra.mxu0 0.0
    %1617 = vmatprep.subr.mxu0 0.0
    %1618 = vmatpush1.msra.mxu0 0.0
    %1619 = vmatprep.subr.mxu0 0.0
    %1620 = vmatpush1.msra.mxu0 0.0
    %1621 = vmatprep.subr.mxu0 0.0
    %1622 = vmatpush1.msra.mxu0 0.0
    %1623 = vmatprep.subr.mxu0 0.0
    %1624 = vmatpush1.msra.mxu0 0.0
    %1625 = vmatprep.subr.mxu0 0.0
    %1626 = vmatpush1.msra.mxu0 0.0
    %1627 = vmatprep.subr.mxu0 0.0
    %1628 = vmatpush1.msra.mxu0 0.0
    %1629 = vmatprep.subr.mxu0 0.0
    %1630 = vmatpush1.msra.mxu0 0.0
    %1631 = vmatprep.subr.mxu0 0.0
    %1632 = vmatpush1.msra.mxu0 0.0
    %1633 = vmatprep.subr.mxu0 0.0
    %1634 = vmatpush1.msra.mxu0 0.0
    %1635 = vmatprep.subr.mxu0 0.0
    %1636 = vmatpush1.msra.mxu0 0.0
    %1637 = vmatprep.subr.mxu0 0.0
    %1638 = vmatpush1.msra.mxu0 0.0
    %1639 = vmatprep.subr.mxu0 0.0
    %1640 = vmatpush1.msra.mxu0 0.0
    %1641 = vmatprep.subr.mxu0 0.0
    %1642 = vmatpush1.msra.mxu0 0.0
    %1643 = vmatprep.subr.mxu0 0.0
    %1644 = vmatpush1.msra.mxu0 0.0
    %1645 = vmatprep.subr.mxu0 0.0
    %1646 = vmatpush1.msra.mxu0 0.0
    %1647 = vmatprep.subr.mxu0 0.0
    %1648 = vmatpush1.msra.mxu0 0.0
    %1649 = vmatprep.subr.mxu0 0.0
    %1650 = vmatpush1.msra.mxu0 0.0
    %1651 = vmatprep.subr.mxu0 0.0
    %1652 = vmatpush1.msra.mxu0 0.0
    %1653 = vmatprep.subr.mxu0 0.0
    %1654 = vmatpush1.msra.mxu0 0.0
    %1655 = vmatprep.subr.mxu0 0.0
    %1656 = vmatpush1.msra.mxu0 0.0
    %1657 = vmatprep.subr.mxu0 0.0
    %1658 = vmatpush1.msra.mxu0 0.0
    %1659 = vmatprep.subr.mxu0 0.0
    %1660 = vmatpush1.msra.mxu0 0.0
    %1661 = vmatprep.subr.mxu0 0.0
    %1662 = vmatpush1.msra.mxu0 0.0
    %1663 = vmatprep.subr.mxu0 0.0
    %1664 = vmatpush1.msra.mxu0 0.0
    %1665 = vmatprep.subr.mxu0 0.0
    %1666 = vmatpush1.msra.mxu0 0.0
    %1667 = vmatprep.subr.mxu0 0.0
    %1668 = vmatpush1.msra.mxu0 0.0
    %1669 = vmatprep.mubr.f32.mxu0 0.0
    %1670 = vmatmul.mubr.f32.gmra.mrb[0].mxu0 %v701
    %v1671 = vpop.f32.mrb[0].mxu0
    %v1672 = vadd.f32 0.0, %v1671
    %v1673 = vpop.f32.mrb[0].mxu0
    %1674 = vdwg.mxu0
    %1675 = vmatprep.subr.mxu0 0.0
    %1676 = vmatpush1.msra.mxu0 %v1253
    %1677 = vmatprep.subr.mxu0 0.0
    %1678 = vmatpush1.msra.mxu0 0.0
    %1679 = vmatprep.subr.mxu0 0.0
    %1680 = vmatpush1.msra.mxu0 0.0
    %1681 = vmatprep.subr.mxu0 0.0
    %1682 = vmatpush1.msra.mxu0 0.0
    %1683 = vmatprep.subr.mxu0 0.0
    %1684 = vmatpush1.msra.mxu0 0.0
    %1685 = vmatprep.subr.mxu0 0.0
    %1686 = vmatpush1.msra.mxu0 0.0
    %1687 = vmatprep.subr.mxu0 0.0
    %1688 = vmatpush1.msra.mxu0 0.0
    %1689 = vmatprep.subr.mxu0 0.0
    %1690 = vmatpush1.msra.mxu0 0.0
    %1691 = vmatprep.subr.mxu0 0.0
    %1692 = vmatpush1.msra.mxu0 0.0
    %1693 = vmatprep.subr.mxu0 0.0
    %1694 = vmatpush1.msra.mxu0 0.0
    %1695 = vmatprep.subr.mxu0 0.0
    %1696 = vmatpush1.msra.mxu0 0.0
    %1697 = vmatprep.subr.mxu0 0.0
    %1698 = vmatpush1.msra.mxu0 0.0
    %1699 = vmatprep.subr.mxu0 0.0
    %1700 = vmatpush1.msra.mxu0 0.0
    %1701 = vmatprep.subr.mxu0 0.0
    %1702 = vmatpush1.msra.mxu0 0.0
    %1703 = vmatprep.subr.mxu0 0.0
    %1704 = vmatpush1.msra.mxu0 0.0
    %1705 = vmatprep.subr.mxu0 0.0
    %1706 = vmatpush1.msra.mxu0 0.0
    %1707 = vmatprep.subr.mxu0 0.0
    %1708 = vmatpush1.msra.mxu0 0.0
    %1709 = vmatprep.subr.mxu0 0.0
    %1710 = vmatpush1.msra.mxu0 0.0
    %1711 = vmatprep.subr.mxu0 0.0
    %1712 = vmatpush1.msra.mxu0 0.0
    %1713 = vmatprep.subr.mxu0 0.0
    %1714 = vmatpush1.msra.mxu0 0.0
    %1715 = vmatprep.subr.mxu0 0.0
    %1716 = vmatpush1.msra.mxu0 0.0
    %1717 = vmatprep.subr.mxu0 0.0
    %1718 = vmatpush1.msra.mxu0 0.0
    %1719 = vmatprep.subr.mxu0 0.0
    %1720 = vmatpush1.msra.mxu0 0.0
    %1721 = vmatprep.subr.mxu0 0.0
    %1722 = vmatpush1.msra.mxu0 0.0
    %1723 = vmatprep.subr.mxu0 0.0
    %1724 = vmatpush1.msra.mxu0 0.0
    %1725 = vmatprep.subr.mxu0 0.0
    %1726 = vmatpush1.msra.mxu0 0.0
    %1727 = vmatprep.subr.mxu0 0.0
    %1728 = vmatpush1.msra.mxu0 0.0
    %1729 = vmatprep.subr.mxu0 0.0
    %1730 = vmatpush1.msra.mxu0 0.0
    %1731 = vmatprep.subr.mxu0 0.0
    %1732 = vmatpush1.msra.mxu0 0.0
    %1733 = vmatprep.subr.mxu0 0.0
    %1734 = vmatpush1.msra.mxu0 0.0
    %1735 = vmatprep.subr.mxu0 0.0
    %1736 = vmatpush1.msra.mxu0 0.0
    %1737 = vmatprep.subr.mxu0 0.0
    %1738 = vmatpush1.msra.mxu0 0.0
    %1739 = vmatprep.mubr.f32.mxu0 0.0
    %1740 = vmatmul.mubr.f32.gmra.mrb[0].mxu0 %v774
    %v1741 = vpop.f32.mrb[0].mxu0
    %v1742 = vadd.f32 0.0, %v1741
    %v1743 = vpop.f32.mrb[0].mxu0
    %1744 = vdwg.mxu0
    %1745 = vmatprep.subr.mxu0 0.0
    %1746 = vmatpush1.msra.mxu0 %v1254
    %1747 = vmatprep.subr.mxu0 0.0
    %1748 = vmatpush1.msra.mxu0 0.0
    %1749 = vmatprep.subr.mxu0 0.0
    %1750 = vmatpush1.msra.mxu0 0.0
    %1751 = vmatprep.subr.mxu0 0.0
    %1752 = vmatpush1.msra.mxu0 0.0
    %1753 = vmatprep.subr.mxu0 0.0
    %1754 = vmatpush1.msra.mxu0 0.0
    %1755 = vmatprep.subr.mxu0 0.0
    %1756 = vmatpush1.msra.mxu0 0.0
    %1757 = vmatprep.subr.mxu0 0.0
    %1758 = vmatpush1.msra.mxu0 0.0
    %1759 = vmatprep.subr.mxu0 0.0
    %1760 = vmatpush1.msra.mxu0 0.0
    %1761 = vmatprep.subr.mxu0 0.0
    %1762 = vmatpush1.msra.mxu0 0.0
    %1763 = vmatprep.subr.mxu0 0.0
    %1764 = vmatpush1.msra.mxu0 0.0
    %1765 = vmatprep.subr.mxu0 0.0
    %1766 = vmatpush1.msra.mxu0 0.0
    %1767 = vmatprep.subr.mxu0 0.0
    %1768 = vmatpush1.msra.mxu0 0.0
    %1769 = vmatprep.subr.mxu0 0.0
    %1770 = vmatpush1.msra.mxu0 0.0
    %1771 = vmatprep.subr.mxu0 0.0
    %1772 = vmatpush1.msra.mxu0 0.0
    %1773 = vmatprep.subr.mxu0 0.0
    %1774 = vmatpush1.msra.mxu0 0.0
    %1775 = vmatprep.subr.mxu0 0.0
    %1776 = vmatpush1.msra.mxu0 0.0
    %1777 = vmatprep.subr.mxu0 0.0
    %1778 = vmatpush1.msra.mxu0 0.0
    %1779 = vmatprep.subr.mxu0 0.0
    %1780 = vmatpush1.msra.mxu0 0.0
    %1781 = vmatprep.subr.mxu0 0.0
    %1782 = vmatpush1.msra.mxu0 0.0
    %1783 = vmatprep.subr.mxu0 0.0
    %1784 = vmatpush1.msra.mxu0 0.0
    %1785 = vmatprep.subr.mxu0 0.0
    %1786 = vmatpush1.msra.mxu0 0.0
    %1787 = vmatprep.subr.mxu0 0.0
    %1788 = vmatpush1.msra.mxu0 0.0
    %1789 = vmatprep.subr.mxu0 0.0
    %1790 = vmatpush1.msra.mxu0 0.0
    %1791 = vmatprep.subr.mxu0 0.0
    %1792 = vmatpush1.msra.mxu0 0.0
    %1793 = vmatprep.subr.mxu0 0.0
    %1794 = vmatpush1.msra.mxu0 0.0
    %1795 = vmatprep.subr.mxu0 0.0
    %1796 = vmatpush1.msra.mxu0 0.0
    %1797 = vmatprep.subr.mxu0 0.0
    %1798 = vmatpush1.msra.mxu0 0.0
    %1799 = vmatprep.subr.mxu0 0.0
    %1800 = vmatpush1.msra.mxu0 0.0
    %1801 = vmatprep.subr.mxu0 0.0
    %1802 = vmatpush1.msra.mxu0 0.0
    %1803 = vmatprep.subr.mxu0 0.0
    %1804 = vmatpush1.msra.mxu0 0.0
    %1805 = vmatprep.subr.mxu0 0.0
    %1806 = vmatpush1.msra.mxu0 0.0
    %1807 = vmatprep.subr.mxu0 0.0
    %1808 = vmatpush1.msra.mxu0 0.0
    %1809 = vmatprep.mubr.f32.mxu0 0.0
    %1810 = vmatmul.mubr.f32.gmra.mrb[0].mxu0 %v847
    %v1811 = vpop.f32.mrb[0].mxu0
    %v1812 = vadd.f32 0.0, %v1811
    %v1813 = vpop.f32.mrb[0].mxu0
    %1814 = vdwg.mxu0
    %v1815 = vsel %vm1137, %v1322, 0.0
    %v1816 = vsel %vm1137, %v1392, 0.0
    %v1817 = vadd.f32 %v1815, %v1816
    %v1818 = vsel %vm1137, %v1462, 0.0
    %v1819 = vadd.f32 %v1817, %v1818
    %v1820 = vsel %vm1137, %v1532, 0.0
    %v1821 = vadd.f32 %v1819, %v1820
    %v1822 = vsel %vm1137, %v1602, 0.0
    %v1823 = vsel %vm1137, %v1672, 0.0
    %v1824 = vadd.f32 %v1822, %v1823
    %v1825 = vsel %vm1137, %v1742, 0.0
    %v1826 = vadd.f32 %v1824, %v1825
    %v1827 = vsel %vm1137, %v1812, 0.0
    %v1828 = vadd.f32 %v1826, %v1827
    %1829 = vset.pattern.permute.xlu0 1
    %1830 = vperm.xlu0 %1829, %v136
    %v1831 = vpop.permute.xlu0 %1830
    %1833 = vset.pattern.permute.xlu0 1
    %1834 = vperm.xlu0 %1833, %v137
    %v1835 = vpop.permute.xlu0 %1834
    %v1837 = vmul.f32 %v1821, %v1831
    %v1838 = vmul.f32 %v1828, %v1835
    %v1839 = vadd.f32 %v1837, 1e-20
    %v1840 = vadd.f32 %v1838, 1e-20
    %1842 = vset.pattern.permute.xlu0 32
    %1843 = vperm.xlu0 %1842, %v1839
    %v1844 = vpop.permute.xlu0 %1843
    %1847 = vset.pattern.permute.xlu0 32
    %1848 = vperm.xlu0 %1847, %v1840
    %v1849 = vpop.permute.xlu0 %1848
    %v1851 = vrcp.pop %v1844
    %v1852 = vmul.f32 %v1837, %v1851
    %v1853 = vrcp.pop %v1849
    %v1854 = vmul.f32 %v1838, %v1853
    %vm1855 = vcmask 261120
    %v1856 = vsel %vm1855, %v1852, 0.0
    %v1857 = vrot.slane %v1856, 4
    %v1858 = vadd.f32 %v1856, %v1857
    %v1859 = vrot.slane %v1858, 2
    %v1860 = vadd.f32 %v1858, %v1859
    %v1861 = vrot.slane %v1860, 1
    %v1862 = vadd.f32 %v1860, %v1861
    %v1863 = vsel %vm1855, %v1854, 0.0
    %v1864 = vrot.slane %v1863, 4
    %v1865 = vadd.f32 %v1863, %v1864
    %v1866 = vrot.slane %v1865, 2
    %v1867 = vadd.f32 %v1865, %v1866
    %v1868 = vrot.slane %v1867, 1
    %v1869 = vadd.f32 %v1867, %v1868
    %v1870 = vrcp.pop 8.0
    %v1871 = vmul.f32 %v1862, %v1870
    %v1872 = vmul.f32 %v1869, %v1870
    %v1873 = vld [vmem:[%s7] sm:$0xff]
    %v1874 = vld [vmem:[%s7 + $0x8] sm:$0xff]
    %v1875 = vld [vmem:[%s7 + $0x10] sm:$0xff]
    %v1876 = vld [vmem:[%s7 + $0x18] sm:$0xff]
    %v1877 = vld [vmem:[%s8] sm:$0x1]
    %v1879 = vlaneseq
    %v1880 = vshrl.u32 %v1879, 7
    %v1881 = vsub.s32 0, %v1880
    %v1882 = vrot.slane %v1877, %v1881
    %vm1886 = vcmask 1041409
    %v1887 = vsel %vm1886, %v1872, %v1871
    %v1888 = vsel %vm1855, %v1887, 0
    %1890 = vmatprep.subr.mxu0 0.0
    %1891 = vmatpush1.msra.mxu0 %v1873
    %1892 = vmatprep.subr.mxu0 0.0
    %1893 = vmatpush1.msra.mxu0 %v1874
    %1894 = vmatprep.subr.mxu0 0.0
    %1895 = vmatpush1.msra.mxu0 %v1875
    %1896 = vmatprep.subr.mxu0 0.0
    %1897 = vmatpush1.msra.mxu0 %v1876
    %1898 = vmatprep.subr.mxu0 0.0
    %1899 = vmatpush1.msra.mxu0 0.0
    %1900 = vmatprep.subr.mxu0 0.0
    %1901 = vmatpush1.msra.mxu0 0.0
    %1902 = vmatprep.subr.mxu0 0.0
    %1903 = vmatpush1.msra.mxu0 0.0
    %1904 = vmatprep.subr.mxu0 0.0
    %1905 = vmatpush1.msra.mxu0 0.0
    %1906 = vmatprep.subr.mxu0 0.0
    %1907 = vmatpush1.msra.mxu0 0.0
    %1908 = vmatprep.subr.mxu0 0.0
    %1909 = vmatpush1.msra.mxu0 0.0
    %1910 = vmatprep.subr.mxu0 0.0
    %1911 = vmatpush1.msra.mxu0 0.0
    %1912 = vmatprep.subr.mxu0 0.0
    %1913 = vmatpush1.msra.mxu0 0.0
    %1914 = vmatprep.subr.mxu0 0.0
    %1915 = vmatpush1.msra.mxu0 0.0
    %1916 = vmatprep.subr.mxu0 0.0
    %1917 = vmatpush1.msra.mxu0 0.0
    %1918 = vmatprep.subr.mxu0 0.0
    %1919 = vmatpush1.msra.mxu0 0.0
    %1920 = vmatprep.subr.mxu0 0.0
    %1921 = vmatpush1.msra.mxu0 0.0
    %1922 = vmatprep.subr.mxu0 0.0
    %1923 = vmatpush1.msra.mxu0 0.0
    %1924 = vmatprep.subr.mxu0 0.0
    %1925 = vmatpush1.msra.mxu0 0.0
    %1926 = vmatprep.subr.mxu0 0.0
    %1927 = vmatpush1.msra.mxu0 0.0
    %1928 = vmatprep.subr.mxu0 0.0
    %1929 = vmatpush1.msra.mxu0 0.0
    %1930 = vmatprep.subr.mxu0 0.0
    %1931 = vmatpush1.msra.mxu0 0.0
    %1932 = vmatprep.subr.mxu0 0.0
    %1933 = vmatpush1.msra.mxu0 0.0
    %1934 = vmatprep.subr.mxu0 0.0
    %1935 = vmatpush1.msra.mxu0 0.0
    %1936 = vmatprep.subr.mxu0 0.0
    %1937 = vmatpush1.msra.mxu0 0.0
    %1938 = vmatprep.subr.mxu0 0.0
    %1939 = vmatpush1.msra.mxu0 0.0
    %1940 = vmatprep.subr.mxu0 0.0
    %1941 = vmatpush1.msra.mxu0 0.0
    %1942 = vmatprep.subr.mxu0 0.0
    %1943 = vmatpush1.msra.mxu0 0.0
    %1944 = vmatprep.subr.mxu0 0.0
    %1945 = vmatpush1.msra.mxu0 0.0
    %1946 = vmatprep.subr.mxu0 0.0
    %1947 = vmatpush1.msra.mxu0 0.0
    %1948 = vmatprep.subr.mxu0 0.0
    %1949 = vmatpush1.msra.mxu0 0.0
    %1950 = vmatprep.subr.mxu0 0.0
    %1951 = vmatpush1.msra.mxu0 0.0
    %1952 = vmatprep.subr.mxu0 0.0
    %1953 = vmatpush1.msra.mxu0 0.0
    %1954 = vmatprep.mubr.f32.mxu0 0.0
    %1955 = vmatmul.mubr.f32.gmra.mrb[0].mxu0 %v1888
    %v1956 = vpop.f32.mrb[0].mxu0
    %v1957 = vadd.f32 %v1882, %v1956
    %v1958 = vpop.f32.mrb[0].mxu0
    %1959 = vdwg.mxu0
    %v1960 = vld [vmem:[%s9] sm:$0xff]
    %v1961 = vld [vmem:[%s9 + $0x8] sm:$0xff]
    %v1962 = vld [vmem:[%s9 + $0x10] sm:$0xff]
    %v1963 = vld [vmem:[%s9 + $0x18] sm:$0xff]
    %v1964 = vld [vmem:[%s9 + $0x20] sm:$0xff]
    %v1965 = vld [vmem:[%s9 + $0x28] sm:$0xff]
    %vm1966 = vcmask 130048
    %v1968 = vsel %vm1966, %v1957, 0
    %1970 = vmatprep.subr.mxu0 0.0
    %1971 = vmatpush1.msra.mxu0 %v1964
    %1972 = vmatprep.subr.mxu0 0.0
    %1973 = vmatpush1.msra.mxu0 %v1965
    %1974 = vmatprep.subr.mxu0 0.0
    %1975 = vmatpush1.msra.mxu0 0.0
    %1976 = vmatprep.subr.mxu0 0.0
    %1977 = vmatpush1.msra.mxu0 0.0
    %1978 = vmatprep.subr.mxu0 0.0
    %1979 = vmatpush1.msra.mxu0 0.0
    %1980 = vmatprep.subr.mxu0 0.0
    %1981 = vmatpush1.msra.mxu0 0.0
    %1982 = vmatprep.subr.mxu0 0.0
    %1983 = vmatpush1.msra.mxu0 0.0
    %1984 = vmatprep.subr.mxu0 0.0
    %1985 = vmatpush1.msra.mxu0 0.0
    %1986 = vmatprep.subr.mxu0 0.0
    %1987 = vmatpush1.msra.mxu0 0.0
    %1988 = vmatprep.subr.mxu0 0.0
    %1989 = vmatpush1.msra.mxu0 0.0
    %1990 = vmatprep.subr.mxu0 0.0
    %1991 = vmatpush1.msra.mxu0 0.0
    %1992 = vmatprep.subr.mxu0 0.0
    %1993 = vmatpush1.msra.mxu0 0.0
    %1994 = vmatprep.subr.mxu0 0.0
    %1995 = vmatpush1.msra.mxu0 0.0
    %1996 = vmatprep.subr.mxu0 0.0
    %1997 = vmatpush1.msra.mxu0 0.0
    %1998 = vmatprep.subr.mxu0 0.0
    %1999 = vmatpush1.msra.mxu0 0.0
    %2000 = vmatprep.subr.mxu0 0.0
    %2001 = vmatpush1.msra.mxu0 0.0
    %2002 = vmatprep.subr.mxu0 0.0
    %2003 = vmatpush1.msra.mxu0 0.0
    %2004 = vmatprep.subr.mxu0 0.0
    %2005 = vmatpush1.msra.mxu0 0.0
    %2006 = vmatprep.subr.mxu0 0.0
    %2007 = vmatpush1.msra.mxu0 0.0
    %2008 = vmatprep.subr.mxu0 0.0
    %2009 = vmatpush1.msra.mxu0 0.0
    %2010 = vmatprep.subr.mxu0 0.0
    %2011 = vmatpush1.msra.mxu0 0.0
    %2012 = vmatprep.subr.mxu0 0.0
    %2013 = vmatpush1.msra.mxu0 0.0
    %2014 = vmatprep.subr.mxu0 0.0
    %2015 = vmatpush1.msra.mxu0 0.0
    %2016 = vmatprep.subr.mxu0 0.0
    %2017 = vmatpush1.msra.mxu0 0.0
    %2018 = vmatprep.subr.mxu0 0.0
    %2019 = vmatpush1.msra.mxu0 0.0
    %2020 = vmatprep.subr.mxu0 0.0
    %2021 = vmatpush1.msra.mxu0 0.0
    %2022 = vmatprep.subr.mxu0 0.0
    %2023 = vmatpush1.msra.mxu0 0.0
    %2024 = vmatprep.subr.mxu0 0.0
    %2025 = vmatpush1.msra.mxu0 0.0
    %2026 = vmatprep.subr.mxu0 0.0
    %2027 = vmatpush1.msra.mxu0 0.0
    %2028 = vmatprep.subr.mxu0 0.0
    %2029 = vmatpush1.msra.mxu0 0.0
    %2030 = vmatprep.subr.mxu0 0.0
    %2031 = vmatpush1.msra.mxu0 0.0
    %2032 = vmatprep.subr.mxu0 0.0
    %2033 = vmatpush1.msra.mxu0 0.0
    %2034 = vmatprep.mubr.f32.mxu0 0.0
    %2035 = vmatmul.mubr.f32.gmra.mrb[0].mxu0 %v1968
    %v2036 = vpop.f32.mrb[0].mxu0
    %v2037 = vadd.f32 0.0, %v2036
    %v2038 = vpop.f32.mrb[0].mxu0
    %2039 = vdwg.mxu0
    %v2041 = vsel %vm1855, %v135, 0
    %2043 = vmatprep.subr.mxu0 0.0
    %2044 = vmatpush1.msra.mxu0 %v1960
    %2045 = vmatprep.subr.mxu0 0.0
    %2046 = vmatpush1.msra.mxu0 %v1961
    %2047 = vmatprep.subr.mxu0 0.0
    %2048 = vmatpush1.msra.mxu0 %v1962
    %2049 = vmatprep.subr.mxu0 0.0
    %2050 = vmatpush1.msra.mxu0 %v1963
    %2051 = vmatprep.subr.mxu0 0.0
    %2052 = vmatpush1.msra.mxu0 0.0
    %2053 = vmatprep.subr.mxu0 0.0
    %2054 = vmatpush1.msra.mxu0 0.0
    %2055 = vmatprep.subr.mxu0 0.0
    %2056 = vmatpush1.msra.mxu0 0.0
    %2057 = vmatprep.subr.mxu0 0.0
    %2058 = vmatpush1.msra.mxu0 0.0
    %2059 = vmatprep.subr.mxu0 0.0
    %2060 = vmatpush1.msra.mxu0 0.0
    %2061 = vmatprep.subr.mxu0 0.0
    %2062 = vmatpush1.msra.mxu0 0.0
    %2063 = vmatprep.subr.mxu0 0.0
    %2064 = vmatpush1.msra.mxu0 0.0
    %2065 = vmatprep.subr.mxu0 0.0
    %2066 = vmatpush1.msra.mxu0 0.0
    %2067 = vmatprep.subr.mxu0 0.0
    %2068 = vmatpush1.msra.mxu0 0.0
    %2069 = vmatprep.subr.mxu0 0.0
    %2070 = vmatpush1.msra.mxu0 0.0
    %2071 = vmatprep.subr.mxu0 0.0
    %2072 = vmatpush1.msra.mxu0 0.0
    %2073 = vmatprep.subr.mxu0 0.0
    %2074 = vmatpush1.msra.mxu0 0.0
    %2075 = vmatprep.subr.mxu0 0.0
    %2076 = vmatpush1.msra.mxu0 0.0
    %2077 = vmatprep.subr.mxu0 0.0
    %2078 = vmatpush1.msra.mxu0 0.0
    %2079 = vmatprep.subr.mxu0 0.0
    %2080 = vmatpush1.msra.mxu0 0.0
    %2081 = vmatprep.subr.mxu0 0.0
    %2082 = vmatpush1.msra.mxu0 0.0
    %2083 = vmatprep.subr.mxu0 0.0
    %2084 = vmatpush1.msra.mxu0 0.0
    %2085 = vmatprep.subr.mxu0 0.0
    %2086 = vmatpush1.msra.mxu0 0.0
    %2087 = vmatprep.subr.mxu0 0.0
    %2088 = vmatpush1.msra.mxu0 0.0
    %2089 = vmatprep.subr.mxu0 0.0
    %2090 = vmatpush1.msra.mxu0 0.0
    %2091 = vmatprep.subr.mxu0 0.0
    %2092 = vmatpush1.msra.mxu0 0.0
    %2093 = vmatprep.subr.mxu0 0.0
    %2094 = vmatpush1.msra.mxu0 0.0
    %2095 = vmatprep.subr.mxu0 0.0
    %2096 = vmatpush1.msra.mxu0 0.0
    %2097 = vmatprep.subr.mxu0 0.0
    %2098 = vmatpush1.msra.mxu0 0.0
    %2099 = vmatprep.subr.mxu0 0.0
    %2100 = vmatpush1.msra.mxu0 0.0
    %2101 = vmatprep.subr.mxu0 0.0
    %2102 = vmatpush1.msra.mxu0 0.0
    %2103 = vmatprep.subr.mxu0 0.0
    %2104 = vmatpush1.msra.mxu0 0.0
    %2105 = vmatprep.subr.mxu0 0.0
    %2106 = vmatpush1.msra.mxu0 0.0
    %2107 = vmatprep.mubr.f32.mxu0 0.0
    %2108 = vmatmul.mubr.f32.gmra.mrb[0].mxu0 %v2041
    %v2109 = vpop.f32.mrb[0].mxu0
    %v2110 = vadd.f32 %v2037, %v2109
    %v2111 = vpop.f32.mrb[0].mxu0
    %2112 = vdwg.mxu0
    %v2113 = vld [vmem:[%s10] sm:$0x1]
    %v2115 = vlaneseq
    %v2116 = vshrl.u32 %v2115, 7
    %v2117 = vsub.s32 0, %v2116
    %v2118 = vrot.slane %v2113, %v2117
    %v2120 = vadd.f32 %v2110, %v2118
    %v2121 = vld [vmem:[%s11] sm:$0xff]
    %v2122 = vld [vmem:[%s11 + $0x8] sm:$0xff]
    %v2123 = vld [vmem:[%s11 + $0x10] sm:$0xff]
    %v2124 = vld [vmem:[%s11 + $0x18] sm:$0xff]
    %v2125 = vld [vmem:[%s12] sm:$0x1]
    %v2127 = vlaneseq
    %v2128 = vshrl.u32 %v2127, 7
    %v2129 = vsub.s32 0, %v2128
    %v2130 = vrot.slane %v2125, %v2129
    %v2133 = vsel %vm1855, %v2120, 0
    %2135 = vmatprep.subr.mxu0 0.0
    %2136 = vmatpush1.msra.mxu0 %v2121
    %2137 = vmatprep.subr.mxu0 0.0
    %2138 = vmatpush1.msra.mxu0 %v2122
    %2139 = vmatprep.subr.mxu0 0.0
    %2140 = vmatpush1.msra.mxu0 %v2123
    %2141 = vmatprep.subr.mxu0 0.0
    %2142 = vmatpush1.msra.mxu0 %v2124
    %2143 = vmatprep.subr.mxu0 0.0
    %2144 = vmatpush1.msra.mxu0 0.0
    %2145 = vmatprep.subr.mxu0 0.0
    %2146 = vmatpush1.msra.mxu0 0.0
    %2147 = vmatprep.subr.mxu0 0.0
    %2148 = vmatpush1.msra.mxu0 0.0
    %2149 = vmatprep.subr.mxu0 0.0
    %2150 = vmatpush1.msra.mxu0 0.0
    %2151 = vmatprep.subr.mxu0 0.0
    %2152 = vmatpush1.msra.mxu0 0.0
    %2153 = vmatprep.subr.mxu0 0.0
    %2154 = vmatpush1.msra.mxu0 0.0
    %2155 = vmatprep.subr.mxu0 0.0
    %2156 = vmatpush1.msra.mxu0 0.0
    %2157 = vmatprep.subr.mxu0 0.0
    %2158 = vmatpush1.msra.mxu0 0.0
    %2159 = vmatprep.subr.mxu0 0.0
    %2160 = vmatpush1.msra.mxu0 0.0
    %2161 = vmatprep.subr.mxu0 0.0
    %2162 = vmatpush1.msra.mxu0 0.0
    %2163 = vmatprep.subr.mxu0 0.0
    %2164 = vmatpush1.msra.mxu0 0.0
    %2165 = vmatprep.subr.mxu0 0.0
    %2166 = vmatpush1.msra.mxu0 0.0
    %2167 = vmatprep.subr.mxu0 0.0
    %2168 = vmatpush1.msra.mxu0 0.0
    %2169 = vmatprep.subr.mxu0 0.0
    %2170 = vmatpush1.msra.mxu0 0.0
    %2171 = vmatprep.subr.mxu0 0.0
    %2172 = vmatpush1.msra.mxu0 0.0
    %2173 = vmatprep.subr.mxu0 0.0
    %2174 = vmatpush1.msra.mxu0 0.0
    %2175 = vmatprep.subr.mxu0 0.0
    %2176 = vmatpush1.msra.mxu0 0.0
    %2177 = vmatprep.subr.mxu0 0.0
    %2178 = vmatpush1.msra.mxu0 0.0
    %2179 = vmatprep.subr.mxu0 0.0
    %2180 = vmatpush1.msra.mxu0 0.0
    %2181 = vmatprep.subr.mxu0 0.0
    %2182 = vmatpush1.msra.mxu0 0.0
    %2183 = vmatprep.subr.mxu0 0.0
    %2184 = vmatpush1.msra.mxu0 0.0
    %2185 = vmatprep.subr.mxu0 0.0
    %2186 = vmatpush1.msra.mxu0 0.0
    %2187 = vmatprep.subr.mxu0 0.0
    %2188 = vmatpush1.msra.mxu0 0.0
    %2189 = vmatprep.subr.mxu0 0.0
    %2190 = vmatpush1.msra.mxu0 0.0
    %2191 = vmatprep.subr.mxu0 0.0
    %2192 = vmatpush1.msra.mxu0 0.0
    %2193 = vmatprep.subr.mxu0 0.0
    %2194 = vmatpush1.msra.mxu0 0.0
    %2195 = vmatprep.subr.mxu0 0.0
    %2196 = vmatpush1.msra.mxu0 0.0
    %2197 = vmatprep.subr.mxu0 0.0
    %2198 = vmatpush1.msra.mxu0 0.0
    %2199 = vmatprep.mubr.f32.mxu0 0.0
    %2200 = vmatmul.mubr.f32.gmra.mrb[0].mxu0 %v2133
    %v2201 = vpop.f32.mrb[0].mxu0
    %v2202 = vadd.f32 %v2130, %v2201
    %v2203 = vpop.f32.mrb[0].mxu0
    %2204 = vdwg.mxu0
    %2205 = vst [vmem:[#allocation2] sm:$0x3] %v2202
    // Predicated region
    $region54: #{tpu_custom_call.1} parent=1 // pred_check
      _
    $region55: #{tpu_custom_call.1} parent=1 // pred_check_branch
      %2207 = sbr.rel (0) target = $region57
    $region56: #{tpu_custom_call.1} parent=1 // pred_region
      %s2209 = ssub.s32 32, 32
      %2210 = vsyncadd [#allocation3], %s2209
      %s2212 = sshll.u32 [#allocation2], 4
      %s2213 = int_to_ptr.vmem [resolvable:$true] %s2212
      %2215 = dma.vmem_to_hbm [thread:$0]  %s2213, 32, %s13, [#allocation3]
    $region57: #{tpu_custom_call.1} parent=1 // pred_fallthru
      _
    // Predicated region
    $region58: #{tpu_custom_call.1} parent=1 // pred_check
      _
    $region59: #{tpu_custom_call.1} parent=1 // pred_check_branch
      %2217 = sbr.rel (0) target = $region61
    $region60: #{tpu_custom_call.1} parent=1 // pred_region
      %2218 = dma.done [#allocation3], 32
    $region61: #{tpu_custom_call.1} parent=1 // pred_fallthru
      _
    %2219 = vsyncpa [#allocation3], 1

</llo_original>
